<compile_context>
chip_gen: v7x
topology: tpu7x:2x2x1
jax: 0.10.0
libtpu: 0.0.40
codegen_flags: <defaults>
</compile_context>

<pallas_src>
import functools

import jax
import jax.numpy as jnp
from jax import lax
from jax.experimental import pallas as pl
from jax.experimental.pallas import tpu as pltpu


def _round_up(x, m):
    return ((x + m - 1) // m) * m


def _vmem_capacity_bytes():
    """Per-chip VMEM capacity; conservative 64 MiB (v7x) fallback."""
    try:
        info = pltpu.get_tpu_info()
        cap = getattr(info, "vmem_capacity_bytes", None)
        if cap:
            return int(cap)
    except Exception:
        pass
    return 64 * 1024 * 1024


# ---------------------------------------------------------------------------
# Recurrent kernel.  gx?_ref hold the precomputed per-gate input projections
# (x_t @ W_i? + b_i? [+ b_h? for r,z]) in bf16, each padded to Hp lanes.
# Per timestep: three per-gate (B,Hp)x(Hp,Hp) bf16 MXU matmuls (f32 accum)
# plus the elementwise gate math in f32.
# ---------------------------------------------------------------------------
def _gru_recurrence_kernel(gxr_ref, gxz_ref, gxn_ref, whh_ref, bhhn_ref,
                           out_ref, h_scratch, *, unroll):
    t_blk = pl.program_id(1)

    @pl.when(t_blk == 0)
    def _():
        h_scratch[...] = jnp.zeros_like(h_scratch)

    hp = out_ref.shape[-1]
    tile_t = out_ref.shape[0]

    # Loop-invariants: load once per grid step, hoisted out of the time loop.
    whh = whh_ref[...]                       # (Hp, 3*Hp) bf16
    w_r = whh[:, 0 * hp:1 * hp]
    w_z = whh[:, 1 * hp:2 * hp]
    w_n = whh[:, 2 * hp:3 * hp]
    bhhn = bhhn_ref[...]                     # (1, Hp) f32 — n-gate hidden bias

    def step(i, h):
        h_b = h.astype(jnp.bfloat16)
        gh_r = jnp.dot(h_b, w_r, preferred_element_type=jnp.float32)
        gh_z = jnp.dot(h_b, w_z, preferred_element_type=jnp.float32)
        gh_n = jnp.dot(h_b, w_n, preferred_element_type=jnp.float32)
        r = jax.nn.sigmoid(gxr_ref[i].astype(jnp.float32) + gh_r)
        z = jax.nn.sigmoid(gxz_ref[i].astype(jnp.float32) + gh_z)
        n = jnp.tanh(gxn_ref[i].astype(jnp.float32) + r * (gh_n + bhhn))
        h_new = n + z * (h - n)              # == (1-z)*n + z*h
        out_ref[i] = h_new
        return h_new

    h_scratch[...] = lax.fori_loop(0, tile_t, step, h_scratch[...],
                                   unroll=unroll)


def _build_recurrence_call(Tp, Bp, hp, tile_t, b_block, unroll, vmem_limit):
    nb = Bp // b_block
    nt = Tp // tile_t
    gx_spec = pl.BlockSpec((tile_t, b_block, hp), lambda b, t: (t, b, 0))
    kernel = functools.partial(_gru_recurrence_kernel, unroll=unroll)
    return pl.pallas_call(
        kernel,
        out_shape=jax.ShapeDtypeStruct((Tp, Bp, hp), jnp.float32),
        grid_spec=pltpu.PrefetchScalarGridSpec(
            num_scalar_prefetch=0,
            grid=(nb, nt),
            in_specs=[
                gx_spec, gx_spec, gx_spec,
                pl.BlockSpec((hp, 3 * hp), lambda b, t: (0, 0)),
                pl.BlockSpec((1, hp), lambda b, t: (0, 0)),
            ],
            out_specs=pl.BlockSpec((tile_t, b_block, hp), lambda b, t: (t, b, 0)),
            scratch_shapes=[pltpu.VMEM((b_block, hp), jnp.float32)],
        ),
        compiler_params=pltpu.CompilerParams(
            # batch blocks are independent (megacore-parallel on v7x);
            # time carries the recurrence -> sequential.
            dimension_semantics=("parallel", "arbitrary"),
            vmem_limit_bytes=int(vmem_limit),
        ),
    )


# ---------------------------------------------------------------------------
# Full forward: equivalent of IntrospectRNN.forward(x) == self.rnn(x) for a
# batch_first GRU.  Also returns the stacked per-layer activations that
# IntrospectRNN.introspect(x) would produce ((B, L, T, H)).
# ---------------------------------------------------------------------------
def gru_forward(x_bf, params, *, hidden_size):
    B, T, _ = x_bf.shape
    H = hidden_size

    Hp = _round_up(max(H, 1), 128)
    Bp = _round_up(max(B, 1), 8)

    # Batch blocking: guarantee >= 2 blocks whenever Bp >= 16 (v7x 2nd TC);
    # allow 256-row blocks only when there is plenty of batch.
    if Bp >= 16:
        cap = 256 if Bp >= 512 else 128
        b_block = min(cap, _round_up(Bp // 2, 8))
    else:
        b_block = Bp
    Bp = _round_up(Bp, b_block)

    # Per-chip VMEM budget; account for weights (double-buffered), bias,
    # scratch and a safety margin when choosing the time tile.
    vmem_cap = _vmem_capacity_bytes()
    vmem_limit = min(int(vmem_cap * 0.75), vmem_cap - 8 * 1024 * 1024)
    fixed_bytes = (2 * (Hp * 3 * Hp * 2)       # whh bf16, double-buffered
                   + 2 * (Hp * 4)              # bhh_n f32, double-buffered
                   + b_block * Hp * 4          # h scratch
                   + (2 << 20))                # compiler headroom
    per_step_bytes = 2 * b_block * Hp * (3 * 2 + 4)  # dbl-buf: 3x bf16 gx + f32 out
    avail = int((vmem_limit - fixed_bytes) * 0.9)
    tile_t = max(1, min(T, avail // per_step_bytes, 512))
    Tp = _round_up(T, tile_t)
    unroll = True if tile_t <= 16 else 8

    call = _build_recurrence_call(Tp, Bp, Hp, tile_t, b_block, unroll, vmem_limit)

    # batch_first -> time-major once; stay time-major across all layers.
    x_tm = jnp.transpose(x_bf, (1, 0, 2)).astype(jnp.float32)

    layer_outs = []
    h_n = []
    layer_in = x_tm           # layer 0: (T, B, I); later layers: (Tp, Bp, Hp)
    padded_in = False
    for (wih, whh, bih, bhh) in params:
        tdim, bdim, in_size = layer_in.shape
        in_bf = layer_in.reshape(tdim * bdim, in_size).astype(jnp.bfloat16)

        # Hoisted per-gate input projections (bf16 operands, f32 accumulate),
        # with b_i? and (for r,z) b_h? folded in; streamed to the kernel as bf16.
        gx_gates = []
        for g in range(3):
            w = jnp.pad(wih[g], ((0, in_size - wih[g].shape[0]), (0, Hp - H)))
            bias = bih[g] + (bhh[g] if g < 2 else jnp.zeros_like(bhh[g]))
            bias = jnp.pad(bias, ((0, 0), (0, Hp - H)))
            gx = jnp.dot(in_bf, w.astype(jnp.bfloat16),
                         preferred_element_type=jnp.float32) + bias
            gx = gx.astype(jnp.bfloat16).reshape(tdim, bdim, Hp)
            if not padded_in:
                gx = jnp.pad(gx, ((0, Tp - tdim), (0, Bp - bdim), (0, 0)))
            gx_gates.append(gx)

        whh_f = jnp.concatenate(
            [jnp.pad(whh[g], ((0, Hp - H), (0, Hp - H))) for g in range(3)],
            axis=-1).astype(jnp.bfloat16)                       # (Hp, 3*Hp)
        bhhn = jnp.pad(bhh[2], ((0, 0), (0, Hp - H))).astype(jnp.float32)

        out_p = call(gx_gates[0], gx_gates[1], gx_gates[2], whh_f, bhhn)

        layer_outs.append(out_p)
        h_n.append(out_p[T - 1, :B, :H])
        layer_in = out_p       # keep padded, time-major between layers
        padded_in = True

    stacked = jnp.stack(layer_outs, axis=0)[:, :T, :B, :H]   # (L, T, B, H)
    output = jnp.transpose(stacked[-1], (1, 0, 2))           # (B, T, H)
    introspect = jnp.transpose(stacked, (2, 0, 1, 3))        # (B, L, T, H)
    return output, jnp.stack(h_n, axis=0), introspect


# ---------------- pure-JAX reference (for numerical check) ------------------
def gru_layer_ref(x_tm, wih, whh, bih, bhh):
    _, B, _ = x_tm.shape
    H = whh.shape[-1]

    def step(h, x_t):
        gx_r = x_t @ wih[0] + bih[0]
        gx_z = x_t @ wih[1] + bih[1]
        gx_n = x_t @ wih[2] + bih[2]
        gh_r = h @ whh[0] + bhh[0]
        gh_z = h @ whh[1] + bhh[1]
        gh_n = h @ whh[2] + bhh[2]
        r = jax.nn.sigmoid(gx_r + gh_r)
        z = jax.nn.sigmoid(gx_z + gh_z)
        n = jnp.tanh(gx_n + r * gh_n)
        h_new = (1.0 - z) * n + z * h
        return h_new, h_new

    _, ys = jax.lax.scan(step, jnp.zeros((B, H), jnp.float32), x_tm)
    return ys


def gru_forward_ref(x_bf, params):
    x_tm = jnp.transpose(x_bf, (1, 0, 2))
    h_n = []
    layer_outs = []
    for (wih, whh, bih, bhh) in params:
        x_tm = gru_layer_ref(x_tm, wih, whh, bih, bhh)
        h_n.append(x_tm[-1])
        layer_outs.append(jnp.transpose(x_tm, (1, 0, 2)))
    output = jnp.transpose(x_tm, (1, 0, 2))
    introspect = jnp.stack(layer_outs, axis=1)
    return output, jnp.stack(h_n, axis=0), introspect


# ---------------- deterministic parameter init (PyTorch-style) --------------
def init_gru_params(key, input_size, hidden_size, num_layers):
    params = []
    bound = 1.0 / jnp.sqrt(hidden_size)
    for layer in range(num_layers):
        in_size = input_size if layer == 0 else hidden_size
        key, k1, k2, k3, k4 = jax.random.split(key, 5)
        wih = jax.random.uniform(k1, (3, in_size, hidden_size),
                                 minval=-bound, maxval=bound, dtype=jnp.float32)
        whh = jax.random.uniform(k2, (3, hidden_size, hidden_size),
                                 minval=-bound, maxval=bound, dtype=jnp.float32)
        bih = jax.random.uniform(k3, (3, 1, hidden_size),
                                 minval=-bound, maxval=bound, dtype=jnp.float32)
        bhh = jax.random.uniform(k4, (3, 1, hidden_size),
                                 minval=-bound, maxval=bound, dtype=jnp.float32)
        params.append((wih, whh, bih, bhh))
    return params


if __name__ == "__main__":
    B, T, I, H, L = 2, 8, 16, 32, 2
    key = jax.random.PRNGKey(0)
    kx, kp = jax.random.split(key)
    x = jax.random.normal(kx, (B, T, I), dtype=jnp.float32)
    params = init_gru_params(kp, I, H, L)

    out, h_n, intro = gru_forward(x, params, hidden_size=H)
    out = jax.block_until_ready(out)
    h_n = jax.block_until_ready(h_n)
    intro = jax.block_until_ready(intro)

    out_ref, h_ref, intro_ref = gru_forward_ref(x, params)
    assert out.shape == (B, T, H) and h_n.shape == (L, B, H) and intro.shape == (B, L, T, H)
    # bf16 matmul operands / activation streams -> looser tolerance than pure f32.
    assert jnp.allclose(out, out_ref, atol=5e-2, rtol=5e-2)
    assert jnp.allclose(h_n, h_ref, atol=5e-2, rtol=5e-2)
    assert jnp.allclose(intro, intro_ref, atol=5e-2, rtol=5e-2)
    print("KERNEL_OK")
</pallas_src>

<mosaic_0001>
module attributes {stable_mosaic.version = 11 : i64} {
  func.func @_gru_recurrence_kernel(%arg0: i32, %arg1: i32, %arg2: memref<8x8x128xbf16, #tpu.memory_space<vmem>>, %arg3: memref<8x8x128xbf16, #tpu.memory_space<vmem>>, %arg4: memref<8x8x128xbf16, #tpu.memory_space<vmem>>, %arg5: memref<128x384xbf16, #tpu.memory_space<vmem>>, %arg6: memref<1x128xf32, #tpu.memory_space<vmem>>, %arg7: memref<8x8x128xf32, #tpu.memory_space<vmem>>, %arg8: memref<8x128xf32, #tpu.memory_space<vmem>>) attributes {dimension_semantics = [#tpu.dimension_semantics<parallel>, #tpu.dimension_semantics<arbitrary>], iteration_bounds = array<i64: 1, 1>, scalar_prefetch = 0 : i64, scratch_operands = 1 : i64, tpu.core_type = #tpu.core_type<tc>, window_params = [{transform_indices = @transform_0, window_bounds = array<i64: 8, 8, 128>}, {transform_indices = @transform_1, window_bounds = array<i64: 8, 8, 128>}, {transform_indices = @transform_2, window_bounds = array<i64: 8, 8, 128>}, {pipeline_mode = #tpu.pipeline_mode<synchronous>, transform_indices = @transform_3, window_bounds = array<i64: 128, 384>}, {pipeline_mode = #tpu.pipeline_mode<synchronous>, transform_indices = @transform_4, window_bounds = array<i64: 1, 128>}, {transform_indices = @transform_5, window_bounds = array<i64: 8, 8, 128>}]} {
    %c0_i32 = arith.constant 0 : i32
    %0 = arith.cmpi eq, %arg1, %c0_i32 : i32
    %1 = arith.extui %0 : i1 to i32
    %c0_i32_0 = arith.constant 0 : i32
    %2 = arith.cmpi ne, %1, %c0_i32_0 : i32
    scf.if %2 {
      %cst_112 = arith.constant 0.000000e+00 : f32
      %330 = vector.broadcast %cst_112 : f32 to vector<8x128xf32>
      %c0_113 = arith.constant 0 : index
      %c0_114 = arith.constant 0 : index
      %331 = vector.load %arg8[%c0_113, %c0_114] : memref<8x128xf32, #tpu.memory_space<vmem>>, vector<8x128xf32>
      tpu.vector_store %arg8[%c0_113, %c0_114], %330 {strides = array<i32>} : memref<8x128xf32, #tpu.memory_space<vmem>>, vector<8x128xf32>,
    } else {
    }
    %c0 = arith.constant 0 : index
    %c0_1 = arith.constant 0 : index
    %3 = vector.load %arg5[%c0, %c0_1] : memref<128x384xbf16, #tpu.memory_space<vmem>>, vector<128x384xbf16>
    %4 = vector.extract_strided_slice %3 {offsets = [0, 0], sizes = [128, 128], strides = [1, 1]} : vector<128x384xbf16> to vector<128x128xbf16>
    %5 = vector.extract_strided_slice %3 {offsets = [0, 128], sizes = [128, 128], strides = [1, 1]} : vector<128x384xbf16> to vector<128x128xbf16>
    %6 = vector.extract_strided_slice %3 {offsets = [0, 256], sizes = [128, 128], strides = [1, 1]} : vector<128x384xbf16> to vector<128x128xbf16>
    %c0_2 = arith.constant 0 : index
    %c0_3 = arith.constant 0 : index
    %7 = vector.load %arg6[%c0_2, %c0_3] : memref<1x128xf32, #tpu.memory_space<vmem>>, vector<1x128xf32>
    %c0_4 = arith.constant 0 : index
    %c0_5 = arith.constant 0 : index
    %8 = vector.load %arg8[%c0_4, %c0_5] : memref<8x128xf32, #tpu.memory_space<vmem>>, vector<8x128xf32>
    %c0_i32_6 = arith.constant 0 : i32
    %9 = arith.truncf %8 : vector<8x128xf32> to vector<8x128xbf16>
    %cst = arith.constant dense<0.000000e+00> : vector<8x128xf32>
    %10 = tpu.matmul %9, %4, %cst {dimension_numbers = #tpu.dot_dimension_numbers<[1], [0], [0], [1], [0, 0, 1, 1], [], []>} : vector<8x128xbf16>, vector<128x128xbf16>, vector<8x128xf32> -> vector<8x128xf32>
    %cst_7 = arith.constant dense<0.000000e+00> : vector<8x128xf32>
    %11 = tpu.matmul %9, %5, %cst_7 {dimension_numbers = #tpu.dot_dimension_numbers<[1], [0], [0], [1], [0, 0, 1, 1], [], []>} : vector<8x128xbf16>, vector<128x128xbf16>, vector<8x128xf32> -> vector<8x128xf32>
    %cst_8 = arith.constant dense<0.000000e+00> : vector<8x128xf32>
    %12 = tpu.matmul %9, %6, %cst_8 {dimension_numbers = #tpu.dot_dimension_numbers<[1], [0], [0], [1], [0, 0, 1, 1], [], []>} : vector<8x128xbf16>, vector<128x128xbf16>, vector<8x128xf32> -> vector<8x128xf32>
    %13 = arith.index_cast %c0_i32_6 : i32 to index
    %c0_9 = arith.constant 0 : index
    %c0_10 = arith.constant 0 : index
    %14 = vector.load %arg2[%13, %c0_9, %c0_10] : memref<8x8x128xbf16, #tpu.memory_space<vmem>>, vector<1x8x128xbf16>
    %15 = vector.shape_cast %14 : vector<1x8x128xbf16> to vector<8x128xbf16>
    %16 = arith.extf %15 : vector<8x128xbf16> to vector<8x128xf32>
    %17 = arith.addf %16, %10 : vector<8x128xf32>
    %18 = arith.negf %17 : vector<8x128xf32>
    %19 = math.exp %18 : vector<8x128xf32>
    %cst_11 = arith.constant 1.000000e+00 : f32
    %20 = vector.broadcast %cst_11 : f32 to vector<8x128xf32>
    %21 = arith.addf %20, %19 : vector<8x128xf32>
    %22 = arith.divf %20, %21 : vector<8x128xf32>
    %23 = arith.index_cast %c0_i32_6 : i32 to index
    %c0_12 = arith.constant 0 : index
    %c0_13 = arith.constant 0 : index
    %24 = vector.load %arg3[%23, %c0_12, %c0_13] : memref<8x8x128xbf16, #tpu.memory_space<vmem>>, vector<1x8x128xbf16>
    %25 = vector.shape_cast %24 : vector<1x8x128xbf16> to vector<8x128xbf16>
    %26 = arith.extf %25 : vector<8x128xbf16> to vector<8x128xf32>
    %27 = arith.addf %26, %11 : vector<8x128xf32>
    %28 = arith.negf %27 : vector<8x128xf32>
    %29 = math.exp %28 : vector<8x128xf32>
    %cst_14 = arith.constant 1.000000e+00 : f32
    %30 = vector.broadcast %cst_14 : f32 to vector<8x128xf32>
    %31 = arith.addf %30, %29 : vector<8x128xf32>
    %32 = arith.divf %30, %31 : vector<8x128xf32>
    %33 = arith.index_cast %c0_i32_6 : i32 to index
    %c0_15 = arith.constant 0 : index
    %c0_16 = arith.constant 0 : index
    %34 = vector.load %arg4[%33, %c0_15, %c0_16] : memref<8x8x128xbf16, #tpu.memory_space<vmem>>, vector<1x8x128xbf16>
    %35 = vector.shape_cast %34 : vector<1x8x128xbf16> to vector<8x128xbf16>
    %36 = arith.extf %35 : vector<8x128xbf16> to vector<8x128xf32>
    %37 = vector.broadcast %7 : vector<1x128xf32> to vector<8x128xf32>
    %38 = arith.addf %12, %37 : vector<8x128xf32>
    %39 = arith.mulf %22, %38 : vector<8x128xf32>
    %40 = arith.addf %36, %39 : vector<8x128xf32>
    %41 = math.tanh %40 : vector<8x128xf32>
    %42 = arith.subf %8, %41 : vector<8x128xf32>
    %43 = arith.mulf %32, %42 : vector<8x128xf32>
    %44 = arith.addf %41, %43 : vector<8x128xf32>
    %45 = arith.index_cast %c0_i32_6 : i32 to index
    %c0_17 = arith.constant 0 : index
    %c0_18 = arith.constant 0 : index
    %46 = vector.load %arg7[%45, %c0_17, %c0_18] : memref<8x8x128xf32, #tpu.memory_space<vmem>>, vector<1x8x128xf32>
    %47 = vector.shape_cast %46 : vector<1x8x128xf32> to vector<8x128xf32>
    %48 = vector.shape_cast %44 : vector<8x128xf32> to vector<1x8x128xf32>
    tpu.vector_store %arg7[%45, %c0_17, %c0_18], %48 {strides = array<i32>} : memref<8x8x128xf32, #tpu.memory_space<vmem>>, vector<1x8x128xf32>,
    %c1_i32 = arith.constant 1 : i32
    %49 = arith.truncf %44 : vector<8x128xf32> to vector<8x128xbf16>
    %cst_19 = arith.constant dense<0.000000e+00> : vector<8x128xf32>
    %50 = tpu.matmul %49, %4, %cst_19 {dimension_numbers = #tpu.dot_dimension_numbers<[1], [0], [0], [1], [0, 0, 1, 1], [], []>} : vector<8x128xbf16>, vector<128x128xbf16>, vector<8x128xf32> -> vector<8x128xf32>
    %cst_20 = arith.constant dense<0.000000e+00> : vector<8x128xf32>
    %51 = tpu.matmul %49, %5, %cst_20 {dimension_numbers = #tpu.dot_dimension_numbers<[1], [0], [0], [1], [0, 0, 1, 1], [], []>} : vector<8x128xbf16>, vector<128x128xbf16>, vector<8x128xf32> -> vector<8x128xf32>
    %cst_21 = arith.constant dense<0.000000e+00> : vector<8x128xf32>
    %52 = tpu.matmul %49, %6, %cst_21 {dimension_numbers = #tpu.dot_dimension_numbers<[1], [0], [0], [1], [0, 0, 1, 1], [], []>} : vector<8x128xbf16>, vector<128x128xbf16>, vector<8x128xf32> -> vector<8x128xf32>
    %53 = arith.index_cast %c1_i32 : i32 to index
    %c0_22 = arith.constant 0 : index
    %c0_23 = arith.constant 0 : index
    %54 = vector.load %arg2[%53, %c0_22, %c0_23] : memref<8x8x128xbf16, #tpu.memory_space<vmem>>, vector<1x8x128xbf16>
    %55 = vector.shape_cast %54 : vector<1x8x128xbf16> to vector<8x128xbf16>
    %56 = arith.extf %55 : vector<8x128xbf16> to vector<8x128xf32>
    %57 = arith.addf %56, %50 : vector<8x128xf32>
    %58 = arith.negf %57 : vector<8x128xf32>
    %59 = math.exp %58 : vector<8x128xf32>
    %cst_24 = arith.constant 1.000000e+00 : f32
    %60 = vector.broadcast %cst_24 : f32 to vector<8x128xf32>
    %61 = arith.addf %60, %59 : vector<8x128xf32>
    %62 = arith.divf %60, %61 : vector<8x128xf32>
    %63 = arith.index_cast %c1_i32 : i32 to index
    %c0_25 = arith.constant 0 : index
    %c0_26 = arith.constant 0 : index
    %64 = vector.load %arg3[%63, %c0_25, %c0_26] : memref<8x8x128xbf16, #tpu.memory_space<vmem>>, vector<1x8x128xbf16>
    %65 = vector.shape_cast %64 : vector<1x8x128xbf16> to vector<8x128xbf16>
    %66 = arith.extf %65 : vector<8x128xbf16> to vector<8x128xf32>
    %67 = arith.addf %66, %51 : vector<8x128xf32>
    %68 = arith.negf %67 : vector<8x128xf32>
    %69 = math.exp %68 : vector<8x128xf32>
    %cst_27 = arith.constant 1.000000e+00 : f32
    %70 = vector.broadcast %cst_27 : f32 to vector<8x128xf32>
    %71 = arith.addf %70, %69 : vector<8x128xf32>
    %72 = arith.divf %70, %71 : vector<8x128xf32>
    %73 = arith.index_cast %c1_i32 : i32 to index
    %c0_28 = arith.constant 0 : index
    %c0_29 = arith.constant 0 : index
    %74 = vector.load %arg4[%73, %c0_28, %c0_29] : memref<8x8x128xbf16, #tpu.memory_space<vmem>>, vector<1x8x128xbf16>
    %75 = vector.shape_cast %74 : vector<1x8x128xbf16> to vector<8x128xbf16>
    %76 = arith.extf %75 : vector<8x128xbf16> to vector<8x128xf32>
    %77 = vector.broadcast %7 : vector<1x128xf32> to vector<8x128xf32>
    %78 = arith.addf %52, %77 : vector<8x128xf32>
    %79 = arith.mulf %62, %78 : vector<8x128xf32>
    %80 = arith.addf %76, %79 : vector<8x128xf32>
    %81 = math.tanh %80 : vector<8x128xf32>
    %82 = arith.subf %44, %81 : vector<8x128xf32>
    %83 = arith.mulf %72, %82 : vector<8x128xf32>
    %84 = arith.addf %81, %83 : vector<8x128xf32>
    %85 = arith.index_cast %c1_i32 : i32 to index
    %c0_30 = arith.constant 0 : index
    %c0_31 = arith.constant 0 : index
    %86 = vector.load %arg7[%85, %c0_30, %c0_31] : memref<8x8x128xf32, #tpu.memory_space<vmem>>, vector<1x8x128xf32>
    %87 = vector.shape_cast %86 : vector<1x8x128xf32> to vector<8x128xf32>
    %88 = vector.shape_cast %84 : vector<8x128xf32> to vector<1x8x128xf32>
    tpu.vector_store %arg7[%85, %c0_30, %c0_31], %88 {strides = array<i32>} : memref<8x8x128xf32, #tpu.memory_space<vmem>>, vector<1x8x128xf32>,
    %c2_i32 = arith.constant 2 : i32
    %89 = arith.truncf %84 : vector<8x128xf32> to vector<8x128xbf16>
    %cst_32 = arith.constant dense<0.000000e+00> : vector<8x128xf32>
    %90 = tpu.matmul %89, %4, %cst_32 {dimension_numbers = #tpu.dot_dimension_numbers<[1], [0], [0], [1], [0, 0, 1, 1], [], []>} : vector<8x128xbf16>, vector<128x128xbf16>, vector<8x128xf32> -> vector<8x128xf32>
    %cst_33 = arith.constant dense<0.000000e+00> : vector<8x128xf32>
    %91 = tpu.matmul %89, %5, %cst_33 {dimension_numbers = #tpu.dot_dimension_numbers<[1], [0], [0], [1], [0, 0, 1, 1], [], []>} : vector<8x128xbf16>, vector<128x128xbf16>, vector<8x128xf32> -> vector<8x128xf32>
    %cst_34 = arith.constant dense<0.000000e+00> : vector<8x128xf32>
    %92 = tpu.matmul %89, %6, %cst_34 {dimension_numbers = #tpu.dot_dimension_numbers<[1], [0], [0], [1], [0, 0, 1, 1], [], []>} : vector<8x128xbf16>, vector<128x128xbf16>, vector<8x128xf32> -> vector<8x128xf32>
    %93 = arith.index_cast %c2_i32 : i32 to index
    %c0_35 = arith.constant 0 : index
    %c0_36 = arith.constant 0 : index
    %94 = vector.load %arg2[%93, %c0_35, %c0_36] : memref<8x8x128xbf16, #tpu.memory_space<vmem>>, vector<1x8x128xbf16>
    %95 = vector.shape_cast %94 : vector<1x8x128xbf16> to vector<8x128xbf16>
    %96 = arith.extf %95 : vector<8x128xbf16> to vector<8x128xf32>
    %97 = arith.addf %96, %90 : vector<8x128xf32>
    %98 = arith.negf %97 : vector<8x128xf32>
    %99 = math.exp %98 : vector<8x128xf32>
    %cst_37 = arith.constant 1.000000e+00 : f32
    %100 = vector.broadcast %cst_37 : f32 to vector<8x128xf32>
    %101 = arith.addf %100, %99 : vector<8x128xf32>
    %102 = arith.divf %100, %101 : vector<8x128xf32>
    %103 = arith.index_cast %c2_i32 : i32 to index
    %c0_38 = arith.constant 0 : index
    %c0_39 = arith.constant 0 : index
    %104 = vector.load %arg3[%103, %c0_38, %c0_39] : memref<8x8x128xbf16, #tpu.memory_space<vmem>>, vector<1x8x128xbf16>
    %105 = vector.shape_cast %104 : vector<1x8x128xbf16> to vector<8x128xbf16>
    %106 = arith.extf %105 : vector<8x128xbf16> to vector<8x128xf32>
    %107 = arith.addf %106, %91 : vector<8x128xf32>
    %108 = arith.negf %107 : vector<8x128xf32>
    %109 = math.exp %108 : vector<8x128xf32>
    %cst_40 = arith.constant 1.000000e+00 : f32
    %110 = vector.broadcast %cst_40 : f32 to vector<8x128xf32>
    %111 = arith.addf %110, %109 : vector<8x128xf32>
    %112 = arith.divf %110, %111 : vector<8x128xf32>
    %113 = arith.index_cast %c2_i32 : i32 to index
    %c0_41 = arith.constant 0 : index
    %c0_42 = arith.constant 0 : index
    %114 = vector.load %arg4[%113, %c0_41, %c0_42] : memref<8x8x128xbf16, #tpu.memory_space<vmem>>, vector<1x8x128xbf16>
    %115 = vector.shape_cast %114 : vector<1x8x128xbf16> to vector<8x128xbf16>
    %116 = arith.extf %115 : vector<8x128xbf16> to vector<8x128xf32>
    %117 = vector.broadcast %7 : vector<1x128xf32> to vector<8x128xf32>
    %118 = arith.addf %92, %117 : vector<8x128xf32>
    %119 = arith.mulf %102, %118 : vector<8x128xf32>
    %120 = arith.addf %116, %119 : vector<8x128xf32>
    %121 = math.tanh %120 : vector<8x128xf32>
    %122 = arith.subf %84, %121 : vector<8x128xf32>
    %123 = arith.mulf %112, %122 : vector<8x128xf32>
    %124 = arith.addf %121, %123 : vector<8x128xf32>
    %125 = arith.index_cast %c2_i32 : i32 to index
    %c0_43 = arith.constant 0 : index
    %c0_44 = arith.constant 0 : index
    %126 = vector.load %arg7[%125, %c0_43, %c0_44] : memref<8x8x128xf32, #tpu.memory_space<vmem>>, vector<1x8x128xf32>
    %127 = vector.shape_cast %126 : vector<1x8x128xf32> to vector<8x128xf32>
    %128 = vector.shape_cast %124 : vector<8x128xf32> to vector<1x8x128xf32>
    tpu.vector_store %arg7[%125, %c0_43, %c0_44], %128 {strides = array<i32>} : memref<8x8x128xf32, #tpu.memory_space<vmem>>, vector<1x8x128xf32>,
    %c3_i32 = arith.constant 3 : i32
    %129 = arith.truncf %124 : vector<8x128xf32> to vector<8x128xbf16>
    %cst_45 = arith.constant dense<0.000000e+00> : vector<8x128xf32>
    %130 = tpu.matmul %129, %4, %cst_45 {dimension_numbers = #tpu.dot_dimension_numbers<[1], [0], [0], [1], [0, 0, 1, 1], [], []>} : vector<8x128xbf16>, vector<128x128xbf16>, vector<8x128xf32> -> vector<8x128xf32>
    %cst_46 = arith.constant dense<0.000000e+00> : vector<8x128xf32>
    %131 = tpu.matmul %129, %5, %cst_46 {dimension_numbers = #tpu.dot_dimension_numbers<[1], [0], [0], [1], [0, 0, 1, 1], [], []>} : vector<8x128xbf16>, vector<128x128xbf16>, vector<8x128xf32> -> vector<8x128xf32>
    %cst_47 = arith.constant dense<0.000000e+00> : vector<8x128xf32>
    %132 = tpu.matmul %129, %6, %cst_47 {dimension_numbers = #tpu.dot_dimension_numbers<[1], [0], [0], [1], [0, 0, 1, 1], [], []>} : vector<8x128xbf16>, vector<128x128xbf16>, vector<8x128xf32> -> vector<8x128xf32>
    %133 = arith.index_cast %c3_i32 : i32 to index
    %c0_48 = arith.constant 0 : index
    %c0_49 = arith.constant 0 : index
    %134 = vector.load %arg2[%133, %c0_48, %c0_49] : memref<8x8x128xbf16, #tpu.memory_space<vmem>>, vector<1x8x128xbf16>
    %135 = vector.shape_cast %134 : vector<1x8x128xbf16> to vector<8x128xbf16>
    %136 = arith.extf %135 : vector<8x128xbf16> to vector<8x128xf32>
    %137 = arith.addf %136, %130 : vector<8x128xf32>
    %138 = arith.negf %137 : vector<8x128xf32>
    %139 = math.exp %138 : vector<8x128xf32>
    %cst_50 = arith.constant 1.000000e+00 : f32
    %140 = vector.broadcast %cst_50 : f32 to vector<8x128xf32>
    %141 = arith.addf %140, %139 : vector<8x128xf32>
    %142 = arith.divf %140, %141 : vector<8x128xf32>
    %143 = arith.index_cast %c3_i32 : i32 to index
    %c0_51 = arith.constant 0 : index
    %c0_52 = arith.constant 0 : index
    %144 = vector.load %arg3[%143, %c0_51, %c0_52] : memref<8x8x128xbf16, #tpu.memory_space<vmem>>, vector<1x8x128xbf16>
    %145 = vector.shape_cast %144 : vector<1x8x128xbf16> to vector<8x128xbf16>
    %146 = arith.extf %145 : vector<8x128xbf16> to vector<8x128xf32>
    %147 = arith.addf %146, %131 : vector<8x128xf32>
    %148 = arith.negf %147 : vector<8x128xf32>
    %149 = math.exp %148 : vector<8x128xf32>
    %cst_53 = arith.constant 1.000000e+00 : f32
    %150 = vector.broadcast %cst_53 : f32 to vector<8x128xf32>
    %151 = arith.addf %150, %149 : vector<8x128xf32>
    %152 = arith.divf %150, %151 : vector<8x128xf32>
    %153 = arith.index_cast %c3_i32 : i32 to index
    %c0_54 = arith.constant 0 : index
    %c0_55 = arith.constant 0 : index
    %154 = vector.load %arg4[%153, %c0_54, %c0_55] : memref<8x8x128xbf16, #tpu.memory_space<vmem>>, vector<1x8x128xbf16>
    %155 = vector.shape_cast %154 : vector<1x8x128xbf16> to vector<8x128xbf16>
    %156 = arith.extf %155 : vector<8x128xbf16> to vector<8x128xf32>
    %157 = vector.broadcast %7 : vector<1x128xf32> to vector<8x128xf32>
    %158 = arith.addf %132, %157 : vector<8x128xf32>
    %159 = arith.mulf %142, %158 : vector<8x128xf32>
    %160 = arith.addf %156, %159 : vector<8x128xf32>
    %161 = math.tanh %160 : vector<8x128xf32>
    %162 = arith.subf %124, %161 : vector<8x128xf32>
    %163 = arith.mulf %152, %162 : vector<8x128xf32>
    %164 = arith.addf %161, %163 : vector<8x128xf32>
    %165 = arith.index_cast %c3_i32 : i32 to index
    %c0_56 = arith.constant 0 : index
    %c0_57 = arith.constant 0 : index
    %166 = vector.load %arg7[%165, %c0_56, %c0_57] : memref<8x8x128xf32, #tpu.memory_space<vmem>>, vector<1x8x128xf32>
    %167 = vector.shape_cast %166 : vector<1x8x128xf32> to vector<8x128xf32>
    %168 = vector.shape_cast %164 : vector<8x128xf32> to vector<1x8x128xf32>
    tpu.vector_store %arg7[%165, %c0_56, %c0_57], %168 {strides = array<i32>} : memref<8x8x128xf32, #tpu.memory_space<vmem>>, vector<1x8x128xf32>,
    %c4_i32 = arith.constant 4 : i32
    %169 = arith.truncf %164 : vector<8x128xf32> to vector<8x128xbf16>
    %cst_58 = arith.constant dense<0.000000e+00> : vector<8x128xf32>
    %170 = tpu.matmul %169, %4, %cst_58 {dimension_numbers = #tpu.dot_dimension_numbers<[1], [0], [0], [1], [0, 0, 1, 1], [], []>} : vector<8x128xbf16>, vector<128x128xbf16>, vector<8x128xf32> -> vector<8x128xf32>
    %cst_59 = arith.constant dense<0.000000e+00> : vector<8x128xf32>
    %171 = tpu.matmul %169, %5, %cst_59 {dimension_numbers = #tpu.dot_dimension_numbers<[1], [0], [0], [1], [0, 0, 1, 1], [], []>} : vector<8x128xbf16>, vector<128x128xbf16>, vector<8x128xf32> -> vector<8x128xf32>
    %cst_60 = arith.constant dense<0.000000e+00> : vector<8x128xf32>
    %172 = tpu.matmul %169, %6, %cst_60 {dimension_numbers = #tpu.dot_dimension_numbers<[1], [0], [0], [1], [0, 0, 1, 1], [], []>} : vector<8x128xbf16>, vector<128x128xbf16>, vector<8x128xf32> -> vector<8x128xf32>
    %173 = arith.index_cast %c4_i32 : i32 to index
    %c0_61 = arith.constant 0 : index
    %c0_62 = arith.constant 0 : index
    %174 = vector.load %arg2[%173, %c0_61, %c0_62] : memref<8x8x128xbf16, #tpu.memory_space<vmem>>, vector<1x8x128xbf16>
    %175 = vector.shape_cast %174 : vector<1x8x128xbf16> to vector<8x128xbf16>
    %176 = arith.extf %175 : vector<8x128xbf16> to vector<8x128xf32>
    %177 = arith.addf %176, %170 : vector<8x128xf32>
    %178 = arith.negf %177 : vector<8x128xf32>
    %179 = math.exp %178 : vector<8x128xf32>
    %cst_63 = arith.constant 1.000000e+00 : f32
    %180 = vector.broadcast %cst_63 : f32 to vector<8x128xf32>
    %181 = arith.addf %180, %179 : vector<8x128xf32>
    %182 = arith.divf %180, %181 : vector<8x128xf32>
    %183 = arith.index_cast %c4_i32 : i32 to index
    %c0_64 = arith.constant 0 : index
    %c0_65 = arith.constant 0 : index
    %184 = vector.load %arg3[%183, %c0_64, %c0_65] : memref<8x8x128xbf16, #tpu.memory_space<vmem>>, vector<1x8x128xbf16>
    %185 = vector.shape_cast %184 : vector<1x8x128xbf16> to vector<8x128xbf16>
    %186 = arith.extf %185 : vector<8x128xbf16> to vector<8x128xf32>
    %187 = arith.addf %186, %171 : vector<8x128xf32>
    %188 = arith.negf %187 : vector<8x128xf32>
    %189 = math.exp %188 : vector<8x128xf32>
    %cst_66 = arith.constant 1.000000e+00 : f32
    %190 = vector.broadcast %cst_66 : f32 to vector<8x128xf32>
    %191 = arith.addf %190, %189 : vector<8x128xf32>
    %192 = arith.divf %190, %191 : vector<8x128xf32>
    %193 = arith.index_cast %c4_i32 : i32 to index
    %c0_67 = arith.constant 0 : index
    %c0_68 = arith.constant 0 : index
    %194 = vector.load %arg4[%193, %c0_67, %c0_68] : memref<8x8x128xbf16, #tpu.memory_space<vmem>>, vector<1x8x128xbf16>
    %195 = vector.shape_cast %194 : vector<1x8x128xbf16> to vector<8x128xbf16>
    %196 = arith.extf %195 : vector<8x128xbf16> to vector<8x128xf32>
    %197 = vector.broadcast %7 : vector<1x128xf32> to vector<8x128xf32>
    %198 = arith.addf %172, %197 : vector<8x128xf32>
    %199 = arith.mulf %182, %198 : vector<8x128xf32>
    %200 = arith.addf %196, %199 : vector<8x128xf32>
    %201 = math.tanh %200 : vector<8x128xf32>
    %202 = arith.subf %164, %201 : vector<8x128xf32>
    %203 = arith.mulf %192, %202 : vector<8x128xf32>
    %204 = arith.addf %201, %203 : vector<8x128xf32>
    %205 = arith.index_cast %c4_i32 : i32 to index
    %c0_69 = arith.constant 0 : index
    %c0_70 = arith.constant 0 : index
    %206 = vector.load %arg7[%205, %c0_69, %c0_70] : memref<8x8x128xf32, #tpu.memory_space<vmem>>, vector<1x8x128xf32>
    %207 = vector.shape_cast %206 : vector<1x8x128xf32> to vector<8x128xf32>
    %208 = vector.shape_cast %204 : vector<8x128xf32> to vector<1x8x128xf32>
    tpu.vector_store %arg7[%205, %c0_69, %c0_70], %208 {strides = array<i32>} : memref<8x8x128xf32, #tpu.memory_space<vmem>>, vector<1x8x128xf32>,
    %c5_i32 = arith.constant 5 : i32
    %209 = arith.truncf %204 : vector<8x128xf32> to vector<8x128xbf16>
    %cst_71 = arith.constant dense<0.000000e+00> : vector<8x128xf32>
    %210 = tpu.matmul %209, %4, %cst_71 {dimension_numbers = #tpu.dot_dimension_numbers<[1], [0], [0], [1], [0, 0, 1, 1], [], []>} : vector<8x128xbf16>, vector<128x128xbf16>, vector<8x128xf32> -> vector<8x128xf32>
    %cst_72 = arith.constant dense<0.000000e+00> : vector<8x128xf32>
    %211 = tpu.matmul %209, %5, %cst_72 {dimension_numbers = #tpu.dot_dimension_numbers<[1], [0], [0], [1], [0, 0, 1, 1], [], []>} : vector<8x128xbf16>, vector<128x128xbf16>, vector<8x128xf32> -> vector<8x128xf32>
    %cst_73 = arith.constant dense<0.000000e+00> : vector<8x128xf32>
    %212 = tpu.matmul %209, %6, %cst_73 {dimension_numbers = #tpu.dot_dimension_numbers<[1], [0], [0], [1], [0, 0, 1, 1], [], []>} : vector<8x128xbf16>, vector<128x128xbf16>, vector<8x128xf32> -> vector<8x128xf32>
    %213 = arith.index_cast %c5_i32 : i32 to index
    %c0_74 = arith.constant 0 : index
    %c0_75 = arith.constant 0 : index
    %214 = vector.load %arg2[%213, %c0_74, %c0_75] : memref<8x8x128xbf16, #tpu.memory_space<vmem>>, vector<1x8x128xbf16>
    %215 = vector.shape_cast %214 : vector<1x8x128xbf16> to vector<8x128xbf16>
    %216 = arith.extf %215 : vector<8x128xbf16> to vector<8x128xf32>
    %217 = arith.addf %216, %210 : vector<8x128xf32>
    %218 = arith.negf %217 : vector<8x128xf32>
    %219 = math.exp %218 : vector<8x128xf32>
    %cst_76 = arith.constant 1.000000e+00 : f32
    %220 = vector.broadcast %cst_76 : f32 to vector<8x128xf32>
    %221 = arith.addf %220, %219 : vector<8x128xf32>
    %222 = arith.divf %220, %221 : vector<8x128xf32>
    %223 = arith.index_cast %c5_i32 : i32 to index
    %c0_77 = arith.constant 0 : index
    %c0_78 = arith.constant 0 : index
    %224 = vector.load %arg3[%223, %c0_77, %c0_78] : memref<8x8x128xbf16, #tpu.memory_space<vmem>>, vector<1x8x128xbf16>
    %225 = vector.shape_cast %224 : vector<1x8x128xbf16> to vector<8x128xbf16>
    %226 = arith.extf %225 : vector<8x128xbf16> to vector<8x128xf32>
    %227 = arith.addf %226, %211 : vector<8x128xf32>
    %228 = arith.negf %227 : vector<8x128xf32>
    %229 = math.exp %228 : vector<8x128xf32>
    %cst_79 = arith.constant 1.000000e+00 : f32
    %230 = vector.broadcast %cst_79 : f32 to vector<8x128xf32>
    %231 = arith.addf %230, %229 : vector<8x128xf32>
    %232 = arith.divf %230, %231 : vector<8x128xf32>
    %233 = arith.index_cast %c5_i32 : i32 to index
    %c0_80 = arith.constant 0 : index
    %c0_81 = arith.constant 0 : index
    %234 = vector.load %arg4[%233, %c0_80, %c0_81] : memref<8x8x128xbf16, #tpu.memory_space<vmem>>, vector<1x8x128xbf16>
    %235 = vector.shape_cast %234 : vector<1x8x128xbf16> to vector<8x128xbf16>
    %236 = arith.extf %235 : vector<8x128xbf16> to vector<8x128xf32>
    %237 = vector.broadcast %7 : vector<1x128xf32> to vector<8x128xf32>
    %238 = arith.addf %212, %237 : vector<8x128xf32>
    %239 = arith.mulf %222, %238 : vector<8x128xf32>
    %240 = arith.addf %236, %239 : vector<8x128xf32>
    %241 = math.tanh %240 : vector<8x128xf32>
    %242 = arith.subf %204, %241 : vector<8x128xf32>
    %243 = arith.mulf %232, %242 : vector<8x128xf32>
    %244 = arith.addf %241, %243 : vector<8x128xf32>
    %245 = arith.index_cast %c5_i32 : i32 to index
    %c0_82 = arith.constant 0 : index
    %c0_83 = arith.constant 0 : index
    %246 = vector.load %arg7[%245, %c0_82, %c0_83] : memref<8x8x128xf32, #tpu.memory_space<vmem>>, vector<1x8x128xf32>
    %247 = vector.shape_cast %246 : vector<1x8x128xf32> to vector<8x128xf32>
    %248 = vector.shape_cast %244 : vector<8x128xf32> to vector<1x8x128xf32>
    tpu.vector_store %arg7[%245, %c0_82, %c0_83], %248 {strides = array<i32>} : memref<8x8x128xf32, #tpu.memory_space<vmem>>, vector<1x8x128xf32>,
    %c6_i32 = arith.constant 6 : i32
    %249 = arith.truncf %244 : vector<8x128xf32> to vector<8x128xbf16>
    %cst_84 = arith.constant dense<0.000000e+00> : vector<8x128xf32>
    %250 = tpu.matmul %249, %4, %cst_84 {dimension_numbers = #tpu.dot_dimension_numbers<[1], [0], [0], [1], [0, 0, 1, 1], [], []>} : vector<8x128xbf16>, vector<128x128xbf16>, vector<8x128xf32> -> vector<8x128xf32>
    %cst_85 = arith.constant dense<0.000000e+00> : vector<8x128xf32>
    %251 = tpu.matmul %249, %5, %cst_85 {dimension_numbers = #tpu.dot_dimension_numbers<[1], [0], [0], [1], [0, 0, 1, 1], [], []>} : vector<8x128xbf16>, vector<128x128xbf16>, vector<8x128xf32> -> vector<8x128xf32>
    %cst_86 = arith.constant dense<0.000000e+00> : vector<8x128xf32>
    %252 = tpu.matmul %249, %6, %cst_86 {dimension_numbers = #tpu.dot_dimension_numbers<[1], [0], [0], [1], [0, 0, 1, 1], [], []>} : vector<8x128xbf16>, vector<128x128xbf16>, vector<8x128xf32> -> vector<8x128xf32>
    %253 = arith.index_cast %c6_i32 : i32 to index
    %c0_87 = arith.constant 0 : index
    %c0_88 = arith.constant 0 : index
    %254 = vector.load %arg2[%253, %c0_87, %c0_88] : memref<8x8x128xbf16, #tpu.memory_space<vmem>>, vector<1x8x128xbf16>
    %255 = vector.shape_cast %254 : vector<1x8x128xbf16> to vector<8x128xbf16>
    %256 = arith.extf %255 : vector<8x128xbf16> to vector<8x128xf32>
    %257 = arith.addf %256, %250 : vector<8x128xf32>
    %258 = arith.negf %257 : vector<8x128xf32>
    %259 = math.exp %258 : vector<8x128xf32>
    %cst_89 = arith.constant 1.000000e+00 : f32
    %260 = vector.broadcast %cst_89 : f32 to vector<8x128xf32>
    %261 = arith.addf %260, %259 : vector<8x128xf32>
    %262 = arith.divf %260, %261 : vector<8x128xf32>
    %263 = arith.index_cast %c6_i32 : i32 to index
    %c0_90 = arith.constant 0 : index
    %c0_91 = arith.constant 0 : index
    %264 = vector.load %arg3[%263, %c0_90, %c0_91] : memref<8x8x128xbf16, #tpu.memory_space<vmem>>, vector<1x8x128xbf16>
    %265 = vector.shape_cast %264 : vector<1x8x128xbf16> to vector<8x128xbf16>
    %266 = arith.extf %265 : vector<8x128xbf16> to vector<8x128xf32>
    %267 = arith.addf %266, %251 : vector<8x128xf32>
    %268 = arith.negf %267 : vector<8x128xf32>
    %269 = math.exp %268 : vector<8x128xf32>
    %cst_92 = arith.constant 1.000000e+00 : f32
    %270 = vector.broadcast %cst_92 : f32 to vector<8x128xf32>
    %271 = arith.addf %270, %269 : vector<8x128xf32>
    %272 = arith.divf %270, %271 : vector<8x128xf32>
    %273 = arith.index_cast %c6_i32 : i32 to index
    %c0_93 = arith.constant 0 : index
    %c0_94 = arith.constant 0 : index
    %274 = vector.load %arg4[%273, %c0_93, %c0_94] : memref<8x8x128xbf16, #tpu.memory_space<vmem>>, vector<1x8x128xbf16>
    %275 = vector.shape_cast %274 : vector<1x8x128xbf16> to vector<8x128xbf16>
    %276 = arith.extf %275 : vector<8x128xbf16> to vector<8x128xf32>
    %277 = vector.broadcast %7 : vector<1x128xf32> to vector<8x128xf32>
    %278 = arith.addf %252, %277 : vector<8x128xf32>
    %279 = arith.mulf %262, %278 : vector<8x128xf32>
    %280 = arith.addf %276, %279 : vector<8x128xf32>
    %281 = math.tanh %280 : vector<8x128xf32>
    %282 = arith.subf %244, %281 : vector<8x128xf32>
    %283 = arith.mulf %272, %282 : vector<8x128xf32>
    %284 = arith.addf %281, %283 : vector<8x128xf32>
    %285 = arith.index_cast %c6_i32 : i32 to index
    %c0_95 = arith.constant 0 : index
    %c0_96 = arith.constant 0 : index
    %286 = vector.load %arg7[%285, %c0_95, %c0_96] : memref<8x8x128xf32, #tpu.memory_space<vmem>>, vector<1x8x128xf32>
    %287 = vector.shape_cast %286 : vector<1x8x128xf32> to vector<8x128xf32>
    %288 = vector.shape_cast %284 : vector<8x128xf32> to vector<1x8x128xf32>
    tpu.vector_store %arg7[%285, %c0_95, %c0_96], %288 {strides = array<i32>} : memref<8x8x128xf32, #tpu.memory_space<vmem>>, vector<1x8x128xf32>,
    %c7_i32 = arith.constant 7 : i32
    %289 = arith.truncf %284 : vector<8x128xf32> to vector<8x128xbf16>
    %cst_97 = arith.constant dense<0.000000e+00> : vector<8x128xf32>
    %290 = tpu.matmul %289, %4, %cst_97 {dimension_numbers = #tpu.dot_dimension_numbers<[1], [0], [0], [1], [0, 0, 1, 1], [], []>} : vector<8x128xbf16>, vector<128x128xbf16>, vector<8x128xf32> -> vector<8x128xf32>
    %cst_98 = arith.constant dense<0.000000e+00> : vector<8x128xf32>
    %291 = tpu.matmul %289, %5, %cst_98 {dimension_numbers = #tpu.dot_dimension_numbers<[1], [0], [0], [1], [0, 0, 1, 1], [], []>} : vector<8x128xbf16>, vector<128x128xbf16>, vector<8x128xf32> -> vector<8x128xf32>
    %cst_99 = arith.constant dense<0.000000e+00> : vector<8x128xf32>
    %292 = tpu.matmul %289, %6, %cst_99 {dimension_numbers = #tpu.dot_dimension_numbers<[1], [0], [0], [1], [0, 0, 1, 1], [], []>} : vector<8x128xbf16>, vector<128x128xbf16>, vector<8x128xf32> -> vector<8x128xf32>
    %293 = arith.index_cast %c7_i32 : i32 to index
    %c0_100 = arith.constant 0 : index
    %c0_101 = arith.constant 0 : index
    %294 = vector.load %arg2[%293, %c0_100, %c0_101] : memref<8x8x128xbf16, #tpu.memory_space<vmem>>, vector<1x8x128xbf16>
    %295 = vector.shape_cast %294 : vector<1x8x128xbf16> to vector<8x128xbf16>
    %296 = arith.extf %295 : vector<8x128xbf16> to vector<8x128xf32>
    %297 = arith.addf %296, %290 : vector<8x128xf32>
    %298 = arith.negf %297 : vector<8x128xf32>
    %299 = math.exp %298 : vector<8x128xf32>
    %cst_102 = arith.constant 1.000000e+00 : f32
    %300 = vector.broadcast %cst_102 : f32 to vector<8x128xf32>
    %301 = arith.addf %300, %299 : vector<8x128xf32>
    %302 = arith.divf %300, %301 : vector<8x128xf32>
    %303 = arith.index_cast %c7_i32 : i32 to index
    %c0_103 = arith.constant 0 : index
    %c0_104 = arith.constant 0 : index
    %304 = vector.load %arg3[%303, %c0_103, %c0_104] : memref<8x8x128xbf16, #tpu.memory_space<vmem>>, vector<1x8x128xbf16>
    %305 = vector.shape_cast %304 : vector<1x8x128xbf16> to vector<8x128xbf16>
    %306 = arith.extf %305 : vector<8x128xbf16> to vector<8x128xf32>
    %307 = arith.addf %306, %291 : vector<8x128xf32>
    %308 = arith.negf %307 : vector<8x128xf32>
    %309 = math.exp %308 : vector<8x128xf32>
    %cst_105 = arith.constant 1.000000e+00 : f32
    %310 = vector.broadcast %cst_105 : f32 to vector<8x128xf32>
    %311 = arith.addf %310, %309 : vector<8x128xf32>
    %312 = arith.divf %310, %311 : vector<8x128xf32>
    %313 = arith.index_cast %c7_i32 : i32 to index
    %c0_106 = arith.constant 0 : index
    %c0_107 = arith.constant 0 : index
    %314 = vector.load %arg4[%313, %c0_106, %c0_107] : memref<8x8x128xbf16, #tpu.memory_space<vmem>>, vector<1x8x128xbf16>
    %315 = vector.shape_cast %314 : vector<1x8x128xbf16> to vector<8x128xbf16>
    %316 = arith.extf %315 : vector<8x128xbf16> to vector<8x128xf32>
    %317 = vector.broadcast %7 : vector<1x128xf32> to vector<8x128xf32>
    %318 = arith.addf %292, %317 : vector<8x128xf32>
    %319 = arith.mulf %302, %318 : vector<8x128xf32>
    %320 = arith.addf %316, %319 : vector<8x128xf32>
    %321 = math.tanh %320 : vector<8x128xf32>
    %322 = arith.subf %284, %321 : vector<8x128xf32>
    %323 = arith.mulf %312, %322 : vector<8x128xf32>
    %324 = arith.addf %321, %323 : vector<8x128xf32>
    %325 = arith.index_cast %c7_i32 : i32 to index
    %c0_108 = arith.constant 0 : index
    %c0_109 = arith.constant 0 : index
    %326 = vector.load %arg7[%325, %c0_108, %c0_109] : memref<8x8x128xf32, #tpu.memory_space<vmem>>, vector<1x8x128xf32>
    %327 = vector.shape_cast %326 : vector<1x8x128xf32> to vector<8x128xf32>
    %328 = vector.shape_cast %324 : vector<8x128xf32> to vector<1x8x128xf32>
    tpu.vector_store %arg7[%325, %c0_108, %c0_109], %328 {strides = array<i32>} : memref<8x8x128xf32, #tpu.memory_space<vmem>>, vector<1x8x128xf32>,
    %c8_i32 = arith.constant 8 : i32
    %c0_110 = arith.constant 0 : index
    %c0_111 = arith.constant 0 : index
    %329 = vector.load %arg8[%c0_110, %c0_111] : memref<8x128xf32, #tpu.memory_space<vmem>>, vector<8x128xf32>
    tpu.vector_store %arg8[%c0_110, %c0_111], %324 {strides = array<i32>} : memref<8x128xf32, #tpu.memory_space<vmem>>, vector<8x128xf32>,
    return
  }
  func.func @transform_0(%arg0: i32, %arg1: i32) -> (i32, i32, i32) {
    %c0_i32 = arith.constant 0 : i32
    %c0_i32_0 = arith.constant 0 : i32
    return %arg1, %arg0, %c0_i32 : i32, i32, i32
  }
  func.func @transform_1(%arg0: i32, %arg1: i32) -> (i32, i32, i32) {
    %c0_i32 = arith.constant 0 : i32
    %c0_i32_0 = arith.constant 0 : i32
    return %arg1, %arg0, %c0_i32 : i32, i32, i32
  }
  func.func @transform_2(%arg0: i32, %arg1: i32) -> (i32, i32, i32) {
    %c0_i32 = arith.constant 0 : i32
    %c0_i32_0 = arith.constant 0 : i32
    return %arg1, %arg0, %c0_i32 : i32, i32, i32
  }
  func.func @transform_3(%arg0: i32, %arg1: i32) -> (i32, i32) {
    %c0_i32 = arith.constant 0 : i32
    %c0_i32_0 = arith.constant 0 : i32
    %c0_i32_1 = arith.constant 0 : i32
    return %c0_i32, %c0_i32_0 : i32, i32
  }
  func.func @transform_4(%arg0: i32, %arg1: i32) -> (i32, i32) {
    %c0_i32 = arith.constant 0 : i32
    %c0_i32_0 = arith.constant 0 : i32
    %c0_i32_1 = arith.constant 0 : i32
    return %c0_i32, %c0_i32_0 : i32, i32
  }
  func.func @transform_5(%arg0: i32, %arg1: i32) -> (i32, i32, i32) {
    %c0_i32 = arith.constant 0 : i32
    %c0_i32_0 = arith.constant 0 : i32
    return %arg1, %arg0, %c0_i32 : i32, i32, i32
  }
}

</mosaic_0001>

<llo_original>
// kernel: tpu_custom_call.1
$region0: #{tpu_custom_call.1}
  #allocation0 [shape = 'u32[]', space=smem, size = 0x4, offset = 0x4, fixed_abs, tag = 'smem constant byte address 0x4 - core index']
  #allocation1 [shape = 'u32[144,128]{1,0:T(1,128)}', space=vmem, size = 0x12000, scoped, tag = 'internal scratch']
  #allocation2 [shape = 'f32[8,128]{1,0:T(8,128)}', space=vmem, size = 0x1000, scoped, tag = 'scratch operand']
  %s0 = inlined_call_operand.hbm [shape: bf16[8,8,128], index: 0, kind: input, shape index: {}]
  %s1 = inlined_call_operand.hbm [shape: bf16[8,8,128], index: 1, kind: input, shape index: {}]
  %s2 = inlined_call_operand.hbm [shape: bf16[8,8,128], index: 2, kind: input, shape index: {}]
  %s3 = inlined_call_operand.hbm [shape: bf16[128,384], index: 3, kind: input, shape index: {}]
  %s4 = inlined_call_operand.vmem [shape: f32[1,128], index: 4, kind: input, shape index: {}]
  %s5 = inlined_call_operand.hbm [shape: f32[8,8,128], index: 5, kind: output, shape index: {}]
  %s6 = sld [smem:[#allocation0]]
  $region50: #{tpu_custom_call.1} parent=0
    _
  %s8 = ssub.s32 1, %s6
  %s9 = scalar_select 0, %s8, %s6
  $region1: #{tpu_custom_call.1} parent=0
    #allocation3 [shape = 'u8[16384]{0}', space=vmem, size = 0x4000, scoped, tag = 'input window, operand 0, single buffered']
    #allocation4 [shape = 's32[1]{0}', space=sflag, size = 0x4, scoped, tag = 'scoped memory for tpu_custom_call.1']
    #allocation5 [shape = 's32[1]{0}', space=sflag, size = 0x4, scoped, tag = 'scoped memory for tpu_custom_call.1']
    #allocation6 [shape = 'u8[16384]{0}', space=vmem, size = 0x4000, scoped, tag = 'input window, operand 1, single buffered']
    #allocation7 [shape = 's32[1]{0}', space=sflag, size = 0x4, scoped, tag = 'scoped memory for tpu_custom_call.1']
    #allocation8 [shape = 'u8[16384]{0}', space=vmem, size = 0x4000, scoped, tag = 'input window, operand 2, single buffered']
    #allocation9 [shape = 'u8[98304]{0}', space=vmem, size = 0x18000, scoped, tag = 'input window, operand 3, single buffered']
    #allocation10 [shape = 's32[1]{0}', space=sflag, size = 0x4, scoped, tag = 'scoped memory for tpu_custom_call.1']
    #allocation11 [shape = 'u8[32768]{0}', space=vmem, size = 0x8000, scoped, tag = 'output window, operand 0, single buffered']
    %10 = vsyncpa [#allocation4], 0
    %11 = vsyncpa [#allocation7], 0
    %12 = vsyncpa [#allocation10], 0
    %13 = vsyncpa [#allocation5], 0
    // Predicated region
    $region2: #{tpu_custom_call.1} parent=1 // pred_check
      _
    $region3: #{tpu_custom_call.1} parent=1 // pred_check_branch
      %15 = sbr.rel (0) target = $region5
    $region4: #{tpu_custom_call.1} parent=1 // pred_region
      %s17 = ssub.s32 512, 512
      %18 = vsyncadd [#allocation4], %s17
      %s19 = sshll.u32 [#allocation3], 4
      %s20 = int_to_ptr.vmem [resolvable:$true] %s19
      %25 = dma.hbm_to_vmem [thread:$0]  %s0, 512, %s20, [#allocation4], 64, 64, 4
    $region5: #{tpu_custom_call.1} parent=1 // pred_fallthru
      _
    // Predicated region
    $region6: #{tpu_custom_call.1} parent=1 // pred_check
      _
    $region7: #{tpu_custom_call.1} parent=1 // pred_check_branch
      %27 = sbr.rel (0) target = $region9
    $region8: #{tpu_custom_call.1} parent=1 // pred_region
      %s29 = ssub.s32 512, 512
      %30 = vsyncadd [#allocation7], %s29
      %s31 = sshll.u32 [#allocation6], 4
      %s32 = int_to_ptr.vmem [resolvable:$true] %s31
      %37 = dma.hbm_to_vmem [thread:$0]  %s1, 512, %s32, [#allocation7], 64, 64, 4
    $region9: #{tpu_custom_call.1} parent=1 // pred_fallthru
      _
    // Predicated region
    $region10: #{tpu_custom_call.1} parent=1 // pred_check
      _
    $region11: #{tpu_custom_call.1} parent=1 // pred_check_branch
      %39 = sbr.rel (0) target = $region13
    $region12: #{tpu_custom_call.1} parent=1 // pred_region
      %s41 = ssub.s32 512, 512
      %42 = vsyncadd [#allocation7], %s41
      %s43 = sshll.u32 [#allocation8], 4
      %s44 = int_to_ptr.vmem [resolvable:$true] %s43
      %49 = dma.hbm_to_vmem [thread:$0]  %s2, 512, %s44, [#allocation7], 64, 64, 4
    $region13: #{tpu_custom_call.1} parent=1 // pred_fallthru
      _
    // Predicated region
    $region14: #{tpu_custom_call.1} parent=1 // pred_check
      _
    $region15: #{tpu_custom_call.1} parent=1 // pred_check_branch
      %51 = sbr.rel (0) target = $region17
    $region16: #{tpu_custom_call.1} parent=1 // pred_region
      %s53 = ssub.s32 3072, 3072
      %54 = vsyncadd [#allocation10], %s53
      %s55 = sshll.u32 [#allocation9], 4
      %s56 = int_to_ptr.vmem [resolvable:$true] %s55
      %61 = dma.hbm_to_vmem [thread:$0]  %s3, 3072, %s56, [#allocation10], 192, 192, 12
    $region17: #{tpu_custom_call.1} parent=1 // pred_fallthru
      _
    // Predicated region
    $region18: #{tpu_custom_call.1} parent=1 // pred_check
      _
    $region19: #{tpu_custom_call.1} parent=1 // pred_check_branch
      %63 = sbr.rel (0) target = $region21
    $region20: #{tpu_custom_call.1} parent=1 // pred_region
      _
    $region21: #{tpu_custom_call.1} parent=1 // pred_fallthru
      _
    // Predicated region
    $region22: #{tpu_custom_call.1} parent=1 // pred_check
      _
    $region23: #{tpu_custom_call.1} parent=1 // pred_check_branch
      %65 = sbr.rel (0) target = $region25
    $region24: #{tpu_custom_call.1} parent=1 // pred_region
      %66 = dma.done [#allocation4], 512
    $region25: #{tpu_custom_call.1} parent=1 // pred_fallthru
      _
    // Predicated region
    $region26: #{tpu_custom_call.1} parent=1 // pred_check
      _
    $region27: #{tpu_custom_call.1} parent=1 // pred_check_branch
      %68 = sbr.rel (0) target = $region29
    $region28: #{tpu_custom_call.1} parent=1 // pred_region
      %69 = dma.done [#allocation7], 512
    $region29: #{tpu_custom_call.1} parent=1 // pred_fallthru
      _
    // Predicated region
    $region30: #{tpu_custom_call.1} parent=1 // pred_check
      _
    $region31: #{tpu_custom_call.1} parent=1 // pred_check_branch
      %71 = sbr.rel (0) target = $region33
    $region32: #{tpu_custom_call.1} parent=1 // pred_region
      %72 = dma.done [#allocation7], 512
    $region33: #{tpu_custom_call.1} parent=1 // pred_fallthru
      _
    // Predicated region
    $region34: #{tpu_custom_call.1} parent=1 // pred_check
      _
    $region35: #{tpu_custom_call.1} parent=1 // pred_check_branch
      %74 = sbr.rel (0) target = $region37
    $region36: #{tpu_custom_call.1} parent=1 // pred_region
      %75 = dma.done [#allocation10], 3072
    $region37: #{tpu_custom_call.1} parent=1 // pred_fallthru
      _
    %p77 = scmp.eq.s32.totalorder 0, 0
    // Predicated region
    $region38: #{tpu_custom_call.1} parent=1 // pred_check
      %p78 = pneg %p77
    $region39: #{tpu_custom_call.1} parent=1 // pred_check_branch
      %80 = sbr.rel (%p78) target = $region41
    $region40: #{tpu_custom_call.1} parent=1 // pred_region
      %81 = vst [vmem:[#allocation2] sm:$0xff] 0.0
    $region41: #{tpu_custom_call.1} parent=1 // pred_fallthru
      _
    %v82 = vld [vmem:[#allocation9] sm:$0xff]
    %v83 = vld [vmem:[#allocation9 + $0x8] sm:$0xf]
    %v84 = vld [vmem:[#allocation9 + $0xc] sm:$0xff]
    %v85 = vld [vmem:[#allocation9 + $0x14] sm:$0xf]
    %v86 = vld [vmem:[#allocation9 + $0x18] sm:$0xff]
    %v87 = vld [vmem:[#allocation9 + $0x20] sm:$0xf]
    %v88 = vld [vmem:[#allocation9 + $0x24] sm:$0xff]
    %v89 = vld [vmem:[#allocation9 + $0x2c] sm:$0xf]
    %v90 = vld [vmem:[#allocation9 + $0x30] sm:$0xff]
    %v91 = vld [vmem:[#allocation9 + $0x38] sm:$0xf]
    %v92 = vld [vmem:[#allocation9 + $0x3c] sm:$0xff]
    %v93 = vld [vmem:[#allocation9 + $0x44] sm:$0xf]
    %v94 = vld [vmem:[#allocation9 + $0x48] sm:$0xff]
    %v95 = vld [vmem:[#allocation9 + $0x50] sm:$0xf]
    %v96 = vld [vmem:[#allocation9 + $0x54] sm:$0xff]
    %v97 = vld [vmem:[#allocation9 + $0x5c] sm:$0xf]
    %v98 = vld [vmem:[#allocation9 + $0x60] sm:$0xff]
    %v99 = vld [vmem:[#allocation9 + $0x68] sm:$0xf]
    %v100 = vld [vmem:[#allocation9 + $0x6c] sm:$0xff]
    %v101 = vld [vmem:[#allocation9 + $0x74] sm:$0xf]
    %v102 = vld [vmem:[#allocation9 + $0x78] sm:$0xff]
    %v103 = vld [vmem:[#allocation9 + $0x80] sm:$0xf]
    %v104 = vld [vmem:[#allocation9 + $0x84] sm:$0xff]
    %v105 = vld [vmem:[#allocation9 + $0x8c] sm:$0xf]
    %v106 = vld [vmem:[#allocation9 + $0x90] sm:$0xff]
    %v107 = vld [vmem:[#allocation9 + $0x98] sm:$0xf]
    %v108 = vld [vmem:[#allocation9 + $0x9c] sm:$0xff]
    %v109 = vld [vmem:[#allocation9 + $0xa4] sm:$0xf]
    %v110 = vld [vmem:[#allocation9 + $0xa8] sm:$0xff]
    %v111 = vld [vmem:[#allocation9 + $0xb0] sm:$0xf]
    %v112 = vld [vmem:[#allocation9 + $0xb4] sm:$0xff]
    %v113 = vld [vmem:[#allocation9 + $0xbc] sm:$0xf]
    %v114 = vld [vmem:[%s4] sm:$0x1]
    %v115 = vld [vmem:[#allocation2] sm:$0xff]
    %v116 = vpack.c.bf16 %v115, %v115
    %v133 = vunpack.c.l.b16 %v82
    %v134 = vunpack.c.l.b16 %v84
    %v135 = vunpack.c.l.b16 %v86
    %v136 = vunpack.c.l.b16 %v88
    %v137 = vunpack.c.l.b16 %v90
    %v138 = vunpack.c.l.b16 %v92
    %v139 = vunpack.c.l.b16 %v94
    %v140 = vunpack.c.l.b16 %v96
    %v141 = vunpack.c.l.b16 %v98
    %v142 = vunpack.c.l.b16 %v100
    %v143 = vunpack.c.l.b16 %v102
    %v144 = vunpack.c.l.b16 %v104
    %v145 = vunpack.c.l.b16 %v106
    %v146 = vunpack.c.l.b16 %v108
    %v147 = vunpack.c.l.b16 %v110
    %v148 = vunpack.c.l.b16 %v112
    %v149 = vpack.c.b16 %v134, %v133
    %v150 = vpack.c.b16 %v136, %v135
    %v151 = vpack.c.b16 %v138, %v137
    %v152 = vpack.c.b16 %v140, %v139
    %v153 = vpack.c.b16 %v142, %v141
    %v154 = vpack.c.b16 %v144, %v143
    %v155 = vpack.c.b16 %v146, %v145
    %v156 = vpack.c.b16 %v148, %v147
    %165 = vmatprep.subr.bf16.mxu0 0
    %166 = vmatpush1.bf16.msra.mxu0 %v149
    %167 = vmatprep.subr.bf16.mxu0 0
    %168 = vmatpush1.bf16.msra.mxu0 %v150
    %169 = vmatprep.subr.bf16.mxu0 0
    %170 = vmatpush1.bf16.msra.mxu0 %v151
    %171 = vmatprep.subr.bf16.mxu0 0
    %172 = vmatpush1.bf16.msra.mxu0 %v152
    %173 = vmatprep.subr.bf16.mxu0 0
    %174 = vmatpush1.bf16.msra.mxu0 %v153
    %175 = vmatprep.subr.bf16.mxu0 0
    %176 = vmatpush1.bf16.msra.mxu0 %v154
    %177 = vmatprep.subr.bf16.mxu0 0
    %178 = vmatpush1.bf16.msra.mxu0 %v155
    %179 = vmatprep.subr.bf16.mxu0 0
    %180 = vmatpush1.bf16.msra.mxu0 %v156
    %181 = vmatprep.subr.bf16.mxu0 0
    %182 = vmatpush1.bf16.msra.mxu0 0
    %183 = vmatprep.subr.bf16.mxu0 0
    %184 = vmatpush1.bf16.msra.mxu0 0
    %185 = vmatprep.subr.bf16.mxu0 0
    %186 = vmatpush1.bf16.msra.mxu0 0
    %187 = vmatprep.subr.bf16.mxu0 0
    %188 = vmatpush1.bf16.msra.mxu0 0
    %189 = vmatprep.subr.bf16.mxu0 0
    %190 = vmatpush1.bf16.msra.mxu0 0
    %191 = vmatprep.subr.bf16.mxu0 0
    %192 = vmatpush1.bf16.msra.mxu0 0
    %193 = vmatprep.subr.bf16.mxu0 0
    %194 = vmatpush1.bf16.msra.mxu0 0
    %195 = vmatprep.subr.bf16.mxu0 0
    %196 = vmatpush1.bf16.msra.mxu0 0
    %197 = vmatprep.mubr.bf16.mxu0 0
    %198 = vmatmul.mubr.bf16.gmra.mrb[0].mxu0 %v116
    %v199 = vpop.f32.mrb[0].mxu0
    %v200 = vadd.f32 0.0, %v199
    %v201 = vpop.f32.mrb[0].mxu0
    %v202 = vpop.f32.mrb[0].mxu0
    %v203 = vpop.f32.mrb[0].mxu0
    %204 = vdwg.mxu0
    %v205 = vunpack.c.h.b16 %v82
    %v206 = vunpack.c.h.b16 %v84
    %v207 = vunpack.c.h.b16 %v86
    %v208 = vunpack.c.h.b16 %v88
    %v209 = vunpack.c.h.b16 %v90
    %v210 = vunpack.c.h.b16 %v92
    %v211 = vunpack.c.h.b16 %v94
    %v212 = vunpack.c.h.b16 %v96
    %v213 = vunpack.c.h.b16 %v98
    %v214 = vunpack.c.h.b16 %v100
    %v215 = vunpack.c.h.b16 %v102
    %v216 = vunpack.c.h.b16 %v104
    %v217 = vunpack.c.h.b16 %v106
    %v218 = vunpack.c.h.b16 %v108
    %v219 = vunpack.c.h.b16 %v110
    %v220 = vunpack.c.h.b16 %v112
    %v221 = vpack.c.b16 %v206, %v205
    %v222 = vpack.c.b16 %v208, %v207
    %v223 = vpack.c.b16 %v210, %v209
    %v224 = vpack.c.b16 %v212, %v211
    %v225 = vpack.c.b16 %v214, %v213
    %v226 = vpack.c.b16 %v216, %v215
    %v227 = vpack.c.b16 %v218, %v217
    %v228 = vpack.c.b16 %v220, %v219
    %237 = vmatprep.subr.bf16.mxu0 0
    %238 = vmatpush1.bf16.msra.mxu0 %v221
    %239 = vmatprep.subr.bf16.mxu0 0
    %240 = vmatpush1.bf16.msra.mxu0 %v222
    %241 = vmatprep.subr.bf16.mxu0 0
    %242 = vmatpush1.bf16.msra.mxu0 %v223
    %243 = vmatprep.subr.bf16.mxu0 0
    %244 = vmatpush1.bf16.msra.mxu0 %v224
    %245 = vmatprep.subr.bf16.mxu0 0
    %246 = vmatpush1.bf16.msra.mxu0 %v225
    %247 = vmatprep.subr.bf16.mxu0 0
    %248 = vmatpush1.bf16.msra.mxu0 %v226
    %249 = vmatprep.subr.bf16.mxu0 0
    %250 = vmatpush1.bf16.msra.mxu0 %v227
    %251 = vmatprep.subr.bf16.mxu0 0
    %252 = vmatpush1.bf16.msra.mxu0 %v228
    %253 = vmatprep.subr.bf16.mxu0 0
    %254 = vmatpush1.bf16.msra.mxu0 0
    %255 = vmatprep.subr.bf16.mxu0 0
    %256 = vmatpush1.bf16.msra.mxu0 0
    %257 = vmatprep.subr.bf16.mxu0 0
    %258 = vmatpush1.bf16.msra.mxu0 0
    %259 = vmatprep.subr.bf16.mxu0 0
    %260 = vmatpush1.bf16.msra.mxu0 0
    %261 = vmatprep.subr.bf16.mxu0 0
    %262 = vmatpush1.bf16.msra.mxu0 0
    %263 = vmatprep.subr.bf16.mxu0 0
    %264 = vmatpush1.bf16.msra.mxu0 0
    %265 = vmatprep.subr.bf16.mxu0 0
    %266 = vmatpush1.bf16.msra.mxu0 0
    %267 = vmatprep.subr.bf16.mxu0 0
    %268 = vmatpush1.bf16.msra.mxu0 0
    %269 = vmatprep.mubr.bf16.mxu0 0
    %270 = vmatmul.mubr.bf16.gmra.mrb[0].mxu0 %v116
    %v271 = vpop.f32.mrb[0].mxu0
    %v272 = vadd.f32 0.0, %v271
    %v273 = vpop.f32.mrb[0].mxu0
    %v274 = vpop.f32.mrb[0].mxu0
    %v275 = vpop.f32.mrb[0].mxu0
    %276 = vdwg.mxu0
    %v277 = vld [vmem:[#allocation3] sm:$0xf]
    %v278 = vunpack.c.l.bf16 %v277
    %v279 = vadd.f32 %v278, %v200
    %v280 = vxor.u32 %v279, 2147483648
    %v281 = vmul.f32 %v280, 1.442695
    %v282 = vpow.pop %v281
    %v283 = vadd.f32 %v282, 1.0
    %v284 = vrcp.pop %v283
    %v285 = vmul.f32 1.0, %v284
    %v286 = vld [vmem:[#allocation6] sm:$0xf]
    %v287 = vunpack.c.l.bf16 %v286
    %v288 = vadd.f32 %v287, %v272
    %v289 = vxor.u32 %v288, 2147483648
    %v290 = vmul.f32 %v289, 1.442695
    %v291 = vpow.pop %v290
    %v292 = vadd.f32 %v291, 1.0
    %v293 = vrcp.pop %v292
    %v294 = vmul.f32 1.0, %v293
    %v295 = vld [vmem:[#allocation8] sm:$0xf]
    %v296 = vunpack.c.l.bf16 %v295
    %v298 = vlaneseq
    %v299 = vshrl.u32 %v298, 7
    %v300 = vsub.s32 0, %v299
    %v301 = vrot.slane %v114, %v300
    %v319 = vunpack.c.l.b16 %v83
    %v320 = vunpack.c.l.b16 %v85
    %v321 = vunpack.c.l.b16 %v87
    %v322 = vunpack.c.l.b16 %v89
    %v323 = vunpack.c.l.b16 %v91
    %v324 = vunpack.c.l.b16 %v93
    %v325 = vunpack.c.l.b16 %v95
    %v326 = vunpack.c.l.b16 %v97
    %v327 = vunpack.c.l.b16 %v99
    %v328 = vunpack.c.l.b16 %v101
    %v329 = vunpack.c.l.b16 %v103
    %v330 = vunpack.c.l.b16 %v105
    %v331 = vunpack.c.l.b16 %v107
    %v332 = vunpack.c.l.b16 %v109
    %v333 = vunpack.c.l.b16 %v111
    %v334 = vunpack.c.l.b16 %v113
    %v335 = vpack.c.b16 %v320, %v319
    %v336 = vpack.c.b16 %v322, %v321
    %v337 = vpack.c.b16 %v324, %v323
    %v338 = vpack.c.b16 %v326, %v325
    %v339 = vpack.c.b16 %v328, %v327
    %v340 = vpack.c.b16 %v330, %v329
    %v341 = vpack.c.b16 %v332, %v331
    %v342 = vpack.c.b16 %v334, %v333
    %351 = vmatprep.subr.bf16.mxu0 0
    %352 = vmatpush1.bf16.msra.mxu0 %v335
    %353 = vmatprep.subr.bf16.mxu0 0
    %354 = vmatpush1.bf16.msra.mxu0 %v336
    %355 = vmatprep.subr.bf16.mxu0 0
    %356 = vmatpush1.bf16.msra.mxu0 %v337
    %357 = vmatprep.subr.bf16.mxu0 0
    %358 = vmatpush1.bf16.msra.mxu0 %v338
    %359 = vmatprep.subr.bf16.mxu0 0
    %360 = vmatpush1.bf16.msra.mxu0 %v339
    %361 = vmatprep.subr.bf16.mxu0 0
    %362 = vmatpush1.bf16.msra.mxu0 %v340
    %363 = vmatprep.subr.bf16.mxu0 0
    %364 = vmatpush1.bf16.msra.mxu0 %v341
    %365 = vmatprep.subr.bf16.mxu0 0
    %366 = vmatpush1.bf16.msra.mxu0 %v342
    %367 = vmatprep.subr.bf16.mxu0 0
    %368 = vmatpush1.bf16.msra.mxu0 0
    %369 = vmatprep.subr.bf16.mxu0 0
    %370 = vmatpush1.bf16.msra.mxu0 0
    %371 = vmatprep.subr.bf16.mxu0 0
    %372 = vmatpush1.bf16.msra.mxu0 0
    %373 = vmatprep.subr.bf16.mxu0 0
    %374 = vmatpush1.bf16.msra.mxu0 0
    %375 = vmatprep.subr.bf16.mxu0 0
    %376 = vmatpush1.bf16.msra.mxu0 0
    %377 = vmatprep.subr.bf16.mxu0 0
    %378 = vmatpush1.bf16.msra.mxu0 0
    %379 = vmatprep.subr.bf16.mxu0 0
    %380 = vmatpush1.bf16.msra.mxu0 0
    %381 = vmatprep.subr.bf16.mxu0 0
    %382 = vmatpush1.bf16.msra.mxu0 0
    %383 = vmatprep.mubr.bf16.mxu0 0
    %384 = vmatmul.mubr.bf16.gmra.mrb[0].mxu0 %v116
    %v385 = vpop.f32.mrb[0].mxu0
    %v386 = vadd.f32 %v301, %v385
    %v387 = vpop.f32.mrb[0].mxu0
    %v388 = vpop.f32.mrb[0].mxu0
    %v389 = vpop.f32.mrb[0].mxu0
    %390 = vdwg.mxu0
    %v391 = vmul.f32 %v285, %v386
    %v392 = vadd.f32 %v296, %v391
    %v393 = vtanh.pop %v392
    %v394 = vsub.f32 %v115, %v393
    %v395 = vmul.f32 %v294, %v394
    %v396 = vadd.f32 %v393, %v395
    %397 = vst [vmem:[#allocation11] sm:$0xff] %v396
    %v398 = vpack.c.bf16 %v396, %v396
    %399 = vmatprep.subr.bf16.mxu0 0
    %400 = vmatpush1.bf16.msra.mxu0 %v149
    %401 = vmatprep.subr.bf16.mxu0 0
    %402 = vmatpush1.bf16.msra.mxu0 %v150
    %403 = vmatprep.subr.bf16.mxu0 0
    %404 = vmatpush1.bf16.msra.mxu0 %v151
    %405 = vmatprep.subr.bf16.mxu0 0
    %406 = vmatpush1.bf16.msra.mxu0 %v152
    %407 = vmatprep.subr.bf16.mxu0 0
    %408 = vmatpush1.bf16.msra.mxu0 %v153
    %409 = vmatprep.subr.bf16.mxu0 0
    %410 = vmatpush1.bf16.msra.mxu0 %v154
    %411 = vmatprep.subr.bf16.mxu0 0
    %412 = vmatpush1.bf16.msra.mxu0 %v155
    %413 = vmatprep.subr.bf16.mxu0 0
    %414 = vmatpush1.bf16.msra.mxu0 %v156
    %415 = vmatprep.subr.bf16.mxu0 0
    %416 = vmatpush1.bf16.msra.mxu0 0
    %417 = vmatprep.subr.bf16.mxu0 0
    %418 = vmatpush1.bf16.msra.mxu0 0
    %419 = vmatprep.subr.bf16.mxu0 0
    %420 = vmatpush1.bf16.msra.mxu0 0
    %421 = vmatprep.subr.bf16.mxu0 0
    %422 = vmatpush1.bf16.msra.mxu0 0
    %423 = vmatprep.subr.bf16.mxu0 0
    %424 = vmatpush1.bf16.msra.mxu0 0
    %425 = vmatprep.subr.bf16.mxu0 0
    %426 = vmatpush1.bf16.msra.mxu0 0
    %427 = vmatprep.subr.bf16.mxu0 0
    %428 = vmatpush1.bf16.msra.mxu0 0
    %429 = vmatprep.subr.bf16.mxu0 0
    %430 = vmatpush1.bf16.msra.mxu0 0
    %431 = vmatprep.mubr.bf16.mxu0 0
    %432 = vmatmul.mubr.bf16.gmra.mrb[0].mxu0 %v398
    %v433 = vpop.f32.mrb[0].mxu0
    %v434 = vadd.f32 0.0, %v433
    %v435 = vpop.f32.mrb[0].mxu0
    %v436 = vpop.f32.mrb[0].mxu0
    %v437 = vpop.f32.mrb[0].mxu0
    %438 = vdwg.mxu0
    %439 = vmatprep.subr.bf16.mxu0 0
    %440 = vmatpush1.bf16.msra.mxu0 %v221
    %441 = vmatprep.subr.bf16.mxu0 0
    %442 = vmatpush1.bf16.msra.mxu0 %v222
    %443 = vmatprep.subr.bf16.mxu0 0
    %444 = vmatpush1.bf16.msra.mxu0 %v223
    %445 = vmatprep.subr.bf16.mxu0 0
    %446 = vmatpush1.bf16.msra.mxu0 %v224
    %447 = vmatprep.subr.bf16.mxu0 0
    %448 = vmatpush1.bf16.msra.mxu0 %v225
    %449 = vmatprep.subr.bf16.mxu0 0
    %450 = vmatpush1.bf16.msra.mxu0 %v226
    %451 = vmatprep.subr.bf16.mxu0 0
    %452 = vmatpush1.bf16.msra.mxu0 %v227
    %453 = vmatprep.subr.bf16.mxu0 0
    %454 = vmatpush1.bf16.msra.mxu0 %v228
    %455 = vmatprep.subr.bf16.mxu0 0
    %456 = vmatpush1.bf16.msra.mxu0 0
    %457 = vmatprep.subr.bf16.mxu0 0
    %458 = vmatpush1.bf16.msra.mxu0 0
    %459 = vmatprep.subr.bf16.mxu0 0
    %460 = vmatpush1.bf16.msra.mxu0 0
    %461 = vmatprep.subr.bf16.mxu0 0
    %462 = vmatpush1.bf16.msra.mxu0 0
    %463 = vmatprep.subr.bf16.mxu0 0
    %464 = vmatpush1.bf16.msra.mxu0 0
    %465 = vmatprep.subr.bf16.mxu0 0
    %466 = vmatpush1.bf16.msra.mxu0 0
    %467 = vmatprep.subr.bf16.mxu0 0
    %468 = vmatpush1.bf16.msra.mxu0 0
    %469 = vmatprep.subr.bf16.mxu0 0
    %470 = vmatpush1.bf16.msra.mxu0 0
    %471 = vmatprep.mubr.bf16.mxu0 0
    %472 = vmatmul.mubr.bf16.gmra.mrb[0].mxu0 %v398
    %v473 = vpop.f32.mrb[0].mxu0
    %v474 = vadd.f32 0.0, %v473
    %v475 = vpop.f32.mrb[0].mxu0
    %v476 = vpop.f32.mrb[0].mxu0
    %v477 = vpop.f32.mrb[0].mxu0
    %478 = vdwg.mxu0
    %s479 = scalar_lea.vmem [#allocation3], 4
    %v480 = vld [vmem:[%s479] sm:$0xf]
    %v481 = vunpack.c.l.bf16 %v480
    %v482 = vadd.f32 %v481, %v434
    %v483 = vxor.u32 %v482, 2147483648
    %v484 = vmul.f32 %v483, 1.442695
    %v485 = vpow.pop %v484
    %v486 = vadd.f32 %v485, 1.0
    %v487 = vrcp.pop %v486
    %v488 = vmul.f32 1.0, %v487
    %s489 = scalar_lea.vmem [#allocation6], 4
    %v490 = vld [vmem:[%s489] sm:$0xf]
    %v491 = vunpack.c.l.bf16 %v490
    %v492 = vadd.f32 %v491, %v474
    %v493 = vxor.u32 %v492, 2147483648
    %v494 = vmul.f32 %v493, 1.442695
    %v495 = vpow.pop %v494
    %v496 = vadd.f32 %v495, 1.0
    %v497 = vrcp.pop %v496
    %v498 = vmul.f32 1.0, %v497
    %s499 = scalar_lea.vmem [#allocation8], 4
    %v500 = vld [vmem:[%s499] sm:$0xf]
    %v501 = vunpack.c.l.bf16 %v500
    %502 = vmatprep.subr.bf16.mxu0 0
    %503 = vmatpush1.bf16.msra.mxu0 %v335
    %504 = vmatprep.subr.bf16.mxu0 0
    %505 = vmatpush1.bf16.msra.mxu0 %v336
    %506 = vmatprep.subr.bf16.mxu0 0
    %507 = vmatpush1.bf16.msra.mxu0 %v337
    %508 = vmatprep.subr.bf16.mxu0 0
    %509 = vmatpush1.bf16.msra.mxu0 %v338
    %510 = vmatprep.subr.bf16.mxu0 0
    %511 = vmatpush1.bf16.msra.mxu0 %v339
    %512 = vmatprep.subr.bf16.mxu0 0
    %513 = vmatpush1.bf16.msra.mxu0 %v340
    %514 = vmatprep.subr.bf16.mxu0 0
    %515 = vmatpush1.bf16.msra.mxu0 %v341
    %516 = vmatprep.subr.bf16.mxu0 0
    %517 = vmatpush1.bf16.msra.mxu0 %v342
    %518 = vmatprep.subr.bf16.mxu0 0
    %519 = vmatpush1.bf16.msra.mxu0 0
    %520 = vmatprep.subr.bf16.mxu0 0
    %521 = vmatpush1.bf16.msra.mxu0 0
    %522 = vmatprep.subr.bf16.mxu0 0
    %523 = vmatpush1.bf16.msra.mxu0 0
    %524 = vmatprep.subr.bf16.mxu0 0
    %525 = vmatpush1.bf16.msra.mxu0 0
    %526 = vmatprep.subr.bf16.mxu0 0
    %527 = vmatpush1.bf16.msra.mxu0 0
    %528 = vmatprep.subr.bf16.mxu0 0
    %529 = vmatpush1.bf16.msra.mxu0 0
    %530 = vmatprep.subr.bf16.mxu0 0
    %531 = vmatpush1.bf16.msra.mxu0 0
    %532 = vmatprep.subr.bf16.mxu0 0
    %533 = vmatpush1.bf16.msra.mxu0 0
    %534 = vmatprep.mubr.bf16.mxu0 0
    %535 = vmatmul.mubr.bf16.gmra.mrb[0].mxu0 %v398
    %v536 = vpop.f32.mrb[0].mxu0
    %v537 = vadd.f32 %v301, %v536
    %v538 = vpop.f32.mrb[0].mxu0
    %v539 = vpop.f32.mrb[0].mxu0
    %v540 = vpop.f32.mrb[0].mxu0
    %541 = vdwg.mxu0
    %v542 = vmul.f32 %v488, %v537
    %v543 = vadd.f32 %v501, %v542
    %v544 = vtanh.pop %v543
    %v545 = vsub.f32 %v396, %v544
    %v546 = vmul.f32 %v498, %v545
    %v547 = vadd.f32 %v544, %v546
    %s548 = scalar_lea.vmem [#allocation11], 8
    %549 = vst [vmem:[%s548] sm:$0xff] %v547
    %v550 = vpack.c.bf16 %v547, %v547
    %551 = vmatprep.subr.bf16.mxu0 0
    %552 = vmatpush1.bf16.msra.mxu0 %v149
    %553 = vmatprep.subr.bf16.mxu0 0
    %554 = vmatpush1.bf16.msra.mxu0 %v150
    %555 = vmatprep.subr.bf16.mxu0 0
    %556 = vmatpush1.bf16.msra.mxu0 %v151
    %557 = vmatprep.subr.bf16.mxu0 0
    %558 = vmatpush1.bf16.msra.mxu0 %v152
    %559 = vmatprep.subr.bf16.mxu0 0
    %560 = vmatpush1.bf16.msra.mxu0 %v153
    %561 = vmatprep.subr.bf16.mxu0 0
    %562 = vmatpush1.bf16.msra.mxu0 %v154
    %563 = vmatprep.subr.bf16.mxu0 0
    %564 = vmatpush1.bf16.msra.mxu0 %v155
    %565 = vmatprep.subr.bf16.mxu0 0
    %566 = vmatpush1.bf16.msra.mxu0 %v156
    %567 = vmatprep.subr.bf16.mxu0 0
    %568 = vmatpush1.bf16.msra.mxu0 0
    %569 = vmatprep.subr.bf16.mxu0 0
    %570 = vmatpush1.bf16.msra.mxu0 0
    %571 = vmatprep.subr.bf16.mxu0 0
    %572 = vmatpush1.bf16.msra.mxu0 0
    %573 = vmatprep.subr.bf16.mxu0 0
    %574 = vmatpush1.bf16.msra.mxu0 0
    %575 = vmatprep.subr.bf16.mxu0 0
    %576 = vmatpush1.bf16.msra.mxu0 0
    %577 = vmatprep.subr.bf16.mxu0 0
    %578 = vmatpush1.bf16.msra.mxu0 0
    %579 = vmatprep.subr.bf16.mxu0 0
    %580 = vmatpush1.bf16.msra.mxu0 0
    %581 = vmatprep.subr.bf16.mxu0 0
    %582 = vmatpush1.bf16.msra.mxu0 0
    %583 = vmatprep.mubr.bf16.mxu0 0
    %584 = vmatmul.mubr.bf16.gmra.mrb[0].mxu0 %v550
    %v585 = vpop.f32.mrb[0].mxu0
    %v586 = vadd.f32 0.0, %v585
    %v587 = vpop.f32.mrb[0].mxu0
    %v588 = vpop.f32.mrb[0].mxu0
    %v589 = vpop.f32.mrb[0].mxu0
    %590 = vdwg.mxu0
    %591 = vmatprep.subr.bf16.mxu0 0
    %592 = vmatpush1.bf16.msra.mxu0 %v221
    %593 = vmatprep.subr.bf16.mxu0 0
    %594 = vmatpush1.bf16.msra.mxu0 %v222
    %595 = vmatprep.subr.bf16.mxu0 0
    %596 = vmatpush1.bf16.msra.mxu0 %v223
    %597 = vmatprep.subr.bf16.mxu0 0
    %598 = vmatpush1.bf16.msra.mxu0 %v224
    %599 = vmatprep.subr.bf16.mxu0 0
    %600 = vmatpush1.bf16.msra.mxu0 %v225
    %601 = vmatprep.subr.bf16.mxu0 0
    %602 = vmatpush1.bf16.msra.mxu0 %v226
    %603 = vmatprep.subr.bf16.mxu0 0
    %604 = vmatpush1.bf16.msra.mxu0 %v227
    %605 = vmatprep.subr.bf16.mxu0 0
    %606 = vmatpush1.bf16.msra.mxu0 %v228
    %607 = vmatprep.subr.bf16.mxu0 0
    %608 = vmatpush1.bf16.msra.mxu0 0
    %609 = vmatprep.subr.bf16.mxu0 0
    %610 = vmatpush1.bf16.msra.mxu0 0
    %611 = vmatprep.subr.bf16.mxu0 0
    %612 = vmatpush1.bf16.msra.mxu0 0
    %613 = vmatprep.subr.bf16.mxu0 0
    %614 = vmatpush1.bf16.msra.mxu0 0
    %615 = vmatprep.subr.bf16.mxu0 0
    %616 = vmatpush1.bf16.msra.mxu0 0
    %617 = vmatprep.subr.bf16.mxu0 0
    %618 = vmatpush1.bf16.msra.mxu0 0
    %619 = vmatprep.subr.bf16.mxu0 0
    %620 = vmatpush1.bf16.msra.mxu0 0
    %621 = vmatprep.subr.bf16.mxu0 0
    %622 = vmatpush1.bf16.msra.mxu0 0
    %623 = vmatprep.mubr.bf16.mxu0 0
    %624 = vmatmul.mubr.bf16.gmra.mrb[0].mxu0 %v550
    %v625 = vpop.f32.mrb[0].mxu0
    %v626 = vadd.f32 0.0, %v625
    %v627 = vpop.f32.mrb[0].mxu0
    %v628 = vpop.f32.mrb[0].mxu0
    %v629 = vpop.f32.mrb[0].mxu0
    %630 = vdwg.mxu0
    %s631 = scalar_lea.vmem [#allocation3], 8
    %v632 = vld [vmem:[%s631] sm:$0xf]
    %v633 = vunpack.c.l.bf16 %v632
    %v634 = vadd.f32 %v633, %v586
    %v635 = vxor.u32 %v634, 2147483648
    %v636 = vmul.f32 %v635, 1.442695
    %v637 = vpow.pop %v636
    %v638 = vadd.f32 %v637, 1.0
    %v639 = vrcp.pop %v638
    %v640 = vmul.f32 1.0, %v639
    %s641 = scalar_lea.vmem [#allocation6], 8
    %v642 = vld [vmem:[%s641] sm:$0xf]
    %v643 = vunpack.c.l.bf16 %v642
    %v644 = vadd.f32 %v643, %v626
    %v645 = vxor.u32 %v644, 2147483648
    %v646 = vmul.f32 %v645, 1.442695
    %v647 = vpow.pop %v646
    %v648 = vadd.f32 %v647, 1.0
    %v649 = vrcp.pop %v648
    %v650 = vmul.f32 1.0, %v649
    %s651 = scalar_lea.vmem [#allocation8], 8
    %v652 = vld [vmem:[%s651] sm:$0xf]
    %v653 = vunpack.c.l.bf16 %v652
    %654 = vmatprep.subr.bf16.mxu0 0
    %655 = vmatpush1.bf16.msra.mxu0 %v335
    %656 = vmatprep.subr.bf16.mxu0 0
    %657 = vmatpush1.bf16.msra.mxu0 %v336
    %658 = vmatprep.subr.bf16.mxu0 0
    %659 = vmatpush1.bf16.msra.mxu0 %v337
    %660 = vmatprep.subr.bf16.mxu0 0
    %661 = vmatpush1.bf16.msra.mxu0 %v338
    %662 = vmatprep.subr.bf16.mxu0 0
    %663 = vmatpush1.bf16.msra.mxu0 %v339
    %664 = vmatprep.subr.bf16.mxu0 0
    %665 = vmatpush1.bf16.msra.mxu0 %v340
    %666 = vmatprep.subr.bf16.mxu0 0
    %667 = vmatpush1.bf16.msra.mxu0 %v341
    %668 = vmatprep.subr.bf16.mxu0 0
    %669 = vmatpush1.bf16.msra.mxu0 %v342
    %670 = vmatprep.subr.bf16.mxu0 0
    %671 = vmatpush1.bf16.msra.mxu0 0
    %672 = vmatprep.subr.bf16.mxu0 0
    %673 = vmatpush1.bf16.msra.mxu0 0
    %674 = vmatprep.subr.bf16.mxu0 0
    %675 = vmatpush1.bf16.msra.mxu0 0
    %676 = vmatprep.subr.bf16.mxu0 0
    %677 = vmatpush1.bf16.msra.mxu0 0
    %678 = vmatprep.subr.bf16.mxu0 0
    %679 = vmatpush1.bf16.msra.mxu0 0
    %680 = vmatprep.subr.bf16.mxu0 0
    %681 = vmatpush1.bf16.msra.mxu0 0
    %682 = vmatprep.subr.bf16.mxu0 0
    %683 = vmatpush1.bf16.msra.mxu0 0
    %684 = vmatprep.subr.bf16.mxu0 0
    %685 = vmatpush1.bf16.msra.mxu0 0
    %686 = vmatprep.mubr.bf16.mxu0 0
    %687 = vmatmul.mubr.bf16.gmra.mrb[0].mxu0 %v550
    %v688 = vpop.f32.mrb[0].mxu0
    %v689 = vadd.f32 %v301, %v688
    %v690 = vpop.f32.mrb[0].mxu0
    %v691 = vpop.f32.mrb[0].mxu0
    %v692 = vpop.f32.mrb[0].mxu0
    %693 = vdwg.mxu0
    %v694 = vmul.f32 %v640, %v689
    %v695 = vadd.f32 %v653, %v694
    %v696 = vtanh.pop %v695
    %v697 = vsub.f32 %v547, %v696
    %v698 = vmul.f32 %v650, %v697
    %v699 = vadd.f32 %v696, %v698
    %s700 = scalar_lea.vmem [#allocation11], 16
    %701 = vst [vmem:[%s700] sm:$0xff] %v699
    %v702 = vpack.c.bf16 %v699, %v699
    %703 = vmatprep.subr.bf16.mxu0 0
    %704 = vmatpush1.bf16.msra.mxu0 %v149
    %705 = vmatprep.subr.bf16.mxu0 0
    %706 = vmatpush1.bf16.msra.mxu0 %v150
    %707 = vmatprep.subr.bf16.mxu0 0
    %708 = vmatpush1.bf16.msra.mxu0 %v151
    %709 = vmatprep.subr.bf16.mxu0 0
    %710 = vmatpush1.bf16.msra.mxu0 %v152
    %711 = vmatprep.subr.bf16.mxu0 0
    %712 = vmatpush1.bf16.msra.mxu0 %v153
    %713 = vmatprep.subr.bf16.mxu0 0
    %714 = vmatpush1.bf16.msra.mxu0 %v154
    %715 = vmatprep.subr.bf16.mxu0 0
    %716 = vmatpush1.bf16.msra.mxu0 %v155
    %717 = vmatprep.subr.bf16.mxu0 0
    %718 = vmatpush1.bf16.msra.mxu0 %v156
    %719 = vmatprep.subr.bf16.mxu0 0
    %720 = vmatpush1.bf16.msra.mxu0 0
    %721 = vmatprep.subr.bf16.mxu0 0
    %722 = vmatpush1.bf16.msra.mxu0 0
    %723 = vmatprep.subr.bf16.mxu0 0
    %724 = vmatpush1.bf16.msra.mxu0 0
    %725 = vmatprep.subr.bf16.mxu0 0
    %726 = vmatpush1.bf16.msra.mxu0 0
    %727 = vmatprep.subr.bf16.mxu0 0
    %728 = vmatpush1.bf16.msra.mxu0 0
    %729 = vmatprep.subr.bf16.mxu0 0
    %730 = vmatpush1.bf16.msra.mxu0 0
    %731 = vmatprep.subr.bf16.mxu0 0
    %732 = vmatpush1.bf16.msra.mxu0 0
    %733 = vmatprep.subr.bf16.mxu0 0
    %734 = vmatpush1.bf16.msra.mxu0 0
    %735 = vmatprep.mubr.bf16.mxu0 0
    %736 = vmatmul.mubr.bf16.gmra.mrb[0].mxu0 %v702
    %v737 = vpop.f32.mrb[0].mxu0
    %v738 = vadd.f32 0.0, %v737
    %v739 = vpop.f32.mrb[0].mxu0
    %v740 = vpop.f32.mrb[0].mxu0
    %v741 = vpop.f32.mrb[0].mxu0
    %742 = vdwg.mxu0
    %743 = vmatprep.subr.bf16.mxu0 0
    %744 = vmatpush1.bf16.msra.mxu0 %v221
    %745 = vmatprep.subr.bf16.mxu0 0
    %746 = vmatpush1.bf16.msra.mxu0 %v222
    %747 = vmatprep.subr.bf16.mxu0 0
    %748 = vmatpush1.bf16.msra.mxu0 %v223
    %749 = vmatprep.subr.bf16.mxu0 0
    %750 = vmatpush1.bf16.msra.mxu0 %v224
    %751 = vmatprep.subr.bf16.mxu0 0
    %752 = vmatpush1.bf16.msra.mxu0 %v225
    %753 = vmatprep.subr.bf16.mxu0 0
    %754 = vmatpush1.bf16.msra.mxu0 %v226
    %755 = vmatprep.subr.bf16.mxu0 0
    %756 = vmatpush1.bf16.msra.mxu0 %v227
    %757 = vmatprep.subr.bf16.mxu0 0
    %758 = vmatpush1.bf16.msra.mxu0 %v228
    %759 = vmatprep.subr.bf16.mxu0 0
    %760 = vmatpush1.bf16.msra.mxu0 0
    %761 = vmatprep.subr.bf16.mxu0 0
    %762 = vmatpush1.bf16.msra.mxu0 0
    %763 = vmatprep.subr.bf16.mxu0 0
    %764 = vmatpush1.bf16.msra.mxu0 0
    %765 = vmatprep.subr.bf16.mxu0 0
    %766 = vmatpush1.bf16.msra.mxu0 0
    %767 = vmatprep.subr.bf16.mxu0 0
    %768 = vmatpush1.bf16.msra.mxu0 0
    %769 = vmatprep.subr.bf16.mxu0 0
    %770 = vmatpush1.bf16.msra.mxu0 0
    %771 = vmatprep.subr.bf16.mxu0 0
    %772 = vmatpush1.bf16.msra.mxu0 0
    %773 = vmatprep.subr.bf16.mxu0 0
    %774 = vmatpush1.bf16.msra.mxu0 0
    %775 = vmatprep.mubr.bf16.mxu0 0
    %776 = vmatmul.mubr.bf16.gmra.mrb[0].mxu0 %v702
    %v777 = vpop.f32.mrb[0].mxu0
    %v778 = vadd.f32 0.0, %v777
    %v779 = vpop.f32.mrb[0].mxu0
    %v780 = vpop.f32.mrb[0].mxu0
    %v781 = vpop.f32.mrb[0].mxu0
    %782 = vdwg.mxu0
    %s783 = scalar_lea.vmem [#allocation3], 12
    %v784 = vld [vmem:[%s783] sm:$0xf]
    %v785 = vunpack.c.l.bf16 %v784
    %v786 = vadd.f32 %v785, %v738
    %v787 = vxor.u32 %v786, 2147483648
    %v788 = vmul.f32 %v787, 1.442695
    %v789 = vpow.pop %v788
    %v790 = vadd.f32 %v789, 1.0
    %v791 = vrcp.pop %v790
    %v792 = vmul.f32 1.0, %v791
    %s793 = scalar_lea.vmem [#allocation6], 12
    %v794 = vld [vmem:[%s793] sm:$0xf]
    %v795 = vunpack.c.l.bf16 %v794
    %v796 = vadd.f32 %v795, %v778
    %v797 = vxor.u32 %v796, 2147483648
    %v798 = vmul.f32 %v797, 1.442695
    %v799 = vpow.pop %v798
    %v800 = vadd.f32 %v799, 1.0
    %v801 = vrcp.pop %v800
    %v802 = vmul.f32 1.0, %v801
    %s803 = scalar_lea.vmem [#allocation8], 12
    %v804 = vld [vmem:[%s803] sm:$0xf]
    %v805 = vunpack.c.l.bf16 %v804
    %806 = vmatprep.subr.bf16.mxu0 0
    %807 = vmatpush1.bf16.msra.mxu0 %v335
    %808 = vmatprep.subr.bf16.mxu0 0
    %809 = vmatpush1.bf16.msra.mxu0 %v336
    %810 = vmatprep.subr.bf16.mxu0 0
    %811 = vmatpush1.bf16.msra.mxu0 %v337
    %812 = vmatprep.subr.bf16.mxu0 0
    %813 = vmatpush1.bf16.msra.mxu0 %v338
    %814 = vmatprep.subr.bf16.mxu0 0
    %815 = vmatpush1.bf16.msra.mxu0 %v339
    %816 = vmatprep.subr.bf16.mxu0 0
    %817 = vmatpush1.bf16.msra.mxu0 %v340
    %818 = vmatprep.subr.bf16.mxu0 0
    %819 = vmatpush1.bf16.msra.mxu0 %v341
    %820 = vmatprep.subr.bf16.mxu0 0
    %821 = vmatpush1.bf16.msra.mxu0 %v342
    %822 = vmatprep.subr.bf16.mxu0 0
    %823 = vmatpush1.bf16.msra.mxu0 0
    %824 = vmatprep.subr.bf16.mxu0 0
    %825 = vmatpush1.bf16.msra.mxu0 0
    %826 = vmatprep.subr.bf16.mxu0 0
    %827 = vmatpush1.bf16.msra.mxu0 0
    %828 = vmatprep.subr.bf16.mxu0 0
    %829 = vmatpush1.bf16.msra.mxu0 0
    %830 = vmatprep.subr.bf16.mxu0 0
    %831 = vmatpush1.bf16.msra.mxu0 0
    %832 = vmatprep.subr.bf16.mxu0 0
    %833 = vmatpush1.bf16.msra.mxu0 0
    %834 = vmatprep.subr.bf16.mxu0 0
    %835 = vmatpush1.bf16.msra.mxu0 0
    %836 = vmatprep.subr.bf16.mxu0 0
    %837 = vmatpush1.bf16.msra.mxu0 0
    %838 = vmatprep.mubr.bf16.mxu0 0
    %839 = vmatmul.mubr.bf16.gmra.mrb[0].mxu0 %v702
    %v840 = vpop.f32.mrb[0].mxu0
    %v841 = vadd.f32 %v301, %v840
    %v842 = vpop.f32.mrb[0].mxu0
    %v843 = vpop.f32.mrb[0].mxu0
    %v844 = vpop.f32.mrb[0].mxu0
    %845 = vdwg.mxu0
    %v846 = vmul.f32 %v792, %v841
    %v847 = vadd.f32 %v805, %v846
    %v848 = vtanh.pop %v847
    %v849 = vsub.f32 %v699, %v848
    %v850 = vmul.f32 %v802, %v849
    %v851 = vadd.f32 %v848, %v850
    %s852 = scalar_lea.vmem [#allocation11], 24
    %853 = vst [vmem:[%s852] sm:$0xff] %v851
    %v854 = vpack.c.bf16 %v851, %v851
    %855 = vmatprep.subr.bf16.mxu0 0
    %856 = vmatpush1.bf16.msra.mxu0 %v149
    %857 = vmatprep.subr.bf16.mxu0 0
    %858 = vmatpush1.bf16.msra.mxu0 %v150
    %859 = vmatprep.subr.bf16.mxu0 0
    %860 = vmatpush1.bf16.msra.mxu0 %v151
    %861 = vmatprep.subr.bf16.mxu0 0
    %862 = vmatpush1.bf16.msra.mxu0 %v152
    %863 = vmatprep.subr.bf16.mxu0 0
    %864 = vmatpush1.bf16.msra.mxu0 %v153
    %865 = vmatprep.subr.bf16.mxu0 0
    %866 = vmatpush1.bf16.msra.mxu0 %v154
    %867 = vmatprep.subr.bf16.mxu0 0
    %868 = vmatpush1.bf16.msra.mxu0 %v155
    %869 = vmatprep.subr.bf16.mxu0 0
    %870 = vmatpush1.bf16.msra.mxu0 %v156
    %871 = vmatprep.subr.bf16.mxu0 0
    %872 = vmatpush1.bf16.msra.mxu0 0
    %873 = vmatprep.subr.bf16.mxu0 0
    %874 = vmatpush1.bf16.msra.mxu0 0
    %875 = vmatprep.subr.bf16.mxu0 0
    %876 = vmatpush1.bf16.msra.mxu0 0
    %877 = vmatprep.subr.bf16.mxu0 0
    %878 = vmatpush1.bf16.msra.mxu0 0
    %879 = vmatprep.subr.bf16.mxu0 0
    %880 = vmatpush1.bf16.msra.mxu0 0
    %881 = vmatprep.subr.bf16.mxu0 0
    %882 = vmatpush1.bf16.msra.mxu0 0
    %883 = vmatprep.subr.bf16.mxu0 0
    %884 = vmatpush1.bf16.msra.mxu0 0
    %885 = vmatprep.subr.bf16.mxu0 0
    %886 = vmatpush1.bf16.msra.mxu0 0
    %887 = vmatprep.mubr.bf16.mxu0 0
    %888 = vmatmul.mubr.bf16.gmra.mrb[0].mxu0 %v854
    %v889 = vpop.f32.mrb[0].mxu0
    %v890 = vadd.f32 0.0, %v889
    %v891 = vpop.f32.mrb[0].mxu0
    %v892 = vpop.f32.mrb[0].mxu0
    %v893 = vpop.f32.mrb[0].mxu0
    %894 = vdwg.mxu0
    %895 = vmatprep.subr.bf16.mxu0 0
    %896 = vmatpush1.bf16.msra.mxu0 %v221
    %897 = vmatprep.subr.bf16.mxu0 0
    %898 = vmatpush1.bf16.msra.mxu0 %v222
    %899 = vmatprep.subr.bf16.mxu0 0
    %900 = vmatpush1.bf16.msra.mxu0 %v223
    %901 = vmatprep.subr.bf16.mxu0 0
    %902 = vmatpush1.bf16.msra.mxu0 %v224
    %903 = vmatprep.subr.bf16.mxu0 0
    %904 = vmatpush1.bf16.msra.mxu0 %v225
    %905 = vmatprep.subr.bf16.mxu0 0
    %906 = vmatpush1.bf16.msra.mxu0 %v226
    %907 = vmatprep.subr.bf16.mxu0 0
    %908 = vmatpush1.bf16.msra.mxu0 %v227
    %909 = vmatprep.subr.bf16.mxu0 0
    %910 = vmatpush1.bf16.msra.mxu0 %v228
    %911 = vmatprep.subr.bf16.mxu0 0
    %912 = vmatpush1.bf16.msra.mxu0 0
    %913 = vmatprep.subr.bf16.mxu0 0
    %914 = vmatpush1.bf16.msra.mxu0 0
    %915 = vmatprep.subr.bf16.mxu0 0
    %916 = vmatpush1.bf16.msra.mxu0 0
    %917 = vmatprep.subr.bf16.mxu0 0
    %918 = vmatpush1.bf16.msra.mxu0 0
    %919 = vmatprep.subr.bf16.mxu0 0
    %920 = vmatpush1.bf16.msra.mxu0 0
    %921 = vmatprep.subr.bf16.mxu0 0
    %922 = vmatpush1.bf16.msra.mxu0 0
    %923 = vmatprep.subr.bf16.mxu0 0
    %924 = vmatpush1.bf16.msra.mxu0 0
    %925 = vmatprep.subr.bf16.mxu0 0
    %926 = vmatpush1.bf16.msra.mxu0 0
    %927 = vmatprep.mubr.bf16.mxu0 0
    %928 = vmatmul.mubr.bf16.gmra.mrb[0].mxu0 %v854
    %v929 = vpop.f32.mrb[0].mxu0
    %v930 = vadd.f32 0.0, %v929
    %v931 = vpop.f32.mrb[0].mxu0
    %v932 = vpop.f32.mrb[0].mxu0
    %v933 = vpop.f32.mrb[0].mxu0
    %934 = vdwg.mxu0
    %s935 = scalar_lea.vmem [#allocation3], 16
    %v936 = vld [vmem:[%s935] sm:$0xf]
    %v937 = vunpack.c.l.bf16 %v936
    %v938 = vadd.f32 %v937, %v890
    %v939 = vxor.u32 %v938, 2147483648
    %v940 = vmul.f32 %v939, 1.442695
    %v941 = vpow.pop %v940
    %v942 = vadd.f32 %v941, 1.0
    %v943 = vrcp.pop %v942
    %v944 = vmul.f32 1.0, %v943
    %s945 = scalar_lea.vmem [#allocation6], 16
    %v946 = vld [vmem:[%s945] sm:$0xf]
    %v947 = vunpack.c.l.bf16 %v946
    %v948 = vadd.f32 %v947, %v930
    %v949 = vxor.u32 %v948, 2147483648
    %v950 = vmul.f32 %v949, 1.442695
    %v951 = vpow.pop %v950
    %v952 = vadd.f32 %v951, 1.0
    %v953 = vrcp.pop %v952
    %v954 = vmul.f32 1.0, %v953
    %s955 = scalar_lea.vmem [#allocation8], 16
    %v956 = vld [vmem:[%s955] sm:$0xf]
    %v957 = vunpack.c.l.bf16 %v956
    %958 = vmatprep.subr.bf16.mxu0 0
    %959 = vmatpush1.bf16.msra.mxu0 %v335
    %960 = vmatprep.subr.bf16.mxu0 0
    %961 = vmatpush1.bf16.msra.mxu0 %v336
    %962 = vmatprep.subr.bf16.mxu0 0
    %963 = vmatpush1.bf16.msra.mxu0 %v337
    %964 = vmatprep.subr.bf16.mxu0 0
    %965 = vmatpush1.bf16.msra.mxu0 %v338
    %966 = vmatprep.subr.bf16.mxu0 0
    %967 = vmatpush1.bf16.msra.mxu0 %v339
    %968 = vmatprep.subr.bf16.mxu0 0
    %969 = vmatpush1.bf16.msra.mxu0 %v340
    %970 = vmatprep.subr.bf16.mxu0 0
    %971 = vmatpush1.bf16.msra.mxu0 %v341
    %972 = vmatprep.subr.bf16.mxu0 0
    %973 = vmatpush1.bf16.msra.mxu0 %v342
    %974 = vmatprep.subr.bf16.mxu0 0
    %975 = vmatpush1.bf16.msra.mxu0 0
    %976 = vmatprep.subr.bf16.mxu0 0
    %977 = vmatpush1.bf16.msra.mxu0 0
    %978 = vmatprep.subr.bf16.mxu0 0
    %979 = vmatpush1.bf16.msra.mxu0 0
    %980 = vmatprep.subr.bf16.mxu0 0
    %981 = vmatpush1.bf16.msra.mxu0 0
    %982 = vmatprep.subr.bf16.mxu0 0
    %983 = vmatpush1.bf16.msra.mxu0 0
    %984 = vmatprep.subr.bf16.mxu0 0
    %985 = vmatpush1.bf16.msra.mxu0 0
    %986 = vmatprep.subr.bf16.mxu0 0
    %987 = vmatpush1.bf16.msra.mxu0 0
    %988 = vmatprep.subr.bf16.mxu0 0
    %989 = vmatpush1.bf16.msra.mxu0 0
    %990 = vmatprep.mubr.bf16.mxu0 0
    %991 = vmatmul.mubr.bf16.gmra.mrb[0].mxu0 %v854
    %v992 = vpop.f32.mrb[0].mxu0
    %v993 = vadd.f32 %v301, %v992
    %v994 = vpop.f32.mrb[0].mxu0
    %v995 = vpop.f32.mrb[0].mxu0
    %v996 = vpop.f32.mrb[0].mxu0
    %997 = vdwg.mxu0
    %v998 = vmul.f32 %v944, %v993
    %v999 = vadd.f32 %v957, %v998
    %v1000 = vtanh.pop %v999
    %v1001 = vsub.f32 %v851, %v1000
    %v1002 = vmul.f32 %v954, %v1001
    %v1003 = vadd.f32 %v1000, %v1002
    %s1004 = scalar_lea.vmem [#allocation11], 32
    %1005 = vst [vmem:[%s1004] sm:$0xff] %v1003
    %v1006 = vpack.c.bf16 %v1003, %v1003
    %1007 = vmatprep.subr.bf16.mxu0 0
    %1008 = vmatpush1.bf16.msra.mxu0 %v149
    %1009 = vmatprep.subr.bf16.mxu0 0
    %1010 = vmatpush1.bf16.msra.mxu0 %v150
    %1011 = vmatprep.subr.bf16.mxu0 0
    %1012 = vmatpush1.bf16.msra.mxu0 %v151
    %1013 = vmatprep.subr.bf16.mxu0 0
    %1014 = vmatpush1.bf16.msra.mxu0 %v152
    %1015 = vmatprep.subr.bf16.mxu0 0
    %1016 = vmatpush1.bf16.msra.mxu0 %v153
    %1017 = vmatprep.subr.bf16.mxu0 0
    %1018 = vmatpush1.bf16.msra.mxu0 %v154
    %1019 = vmatprep.subr.bf16.mxu0 0
    %1020 = vmatpush1.bf16.msra.mxu0 %v155
    %1021 = vmatprep.subr.bf16.mxu0 0
    %1022 = vmatpush1.bf16.msra.mxu0 %v156
    %1023 = vmatprep.subr.bf16.mxu0 0
    %1024 = vmatpush1.bf16.msra.mxu0 0
    %1025 = vmatprep.subr.bf16.mxu0 0
    %1026 = vmatpush1.bf16.msra.mxu0 0
    %1027 = vmatprep.subr.bf16.mxu0 0
    %1028 = vmatpush1.bf16.msra.mxu0 0
    %1029 = vmatprep.subr.bf16.mxu0 0
    %1030 = vmatpush1.bf16.msra.mxu0 0
    %1031 = vmatprep.subr.bf16.mxu0 0
    %1032 = vmatpush1.bf16.msra.mxu0 0
    %1033 = vmatprep.subr.bf16.mxu0 0
    %1034 = vmatpush1.bf16.msra.mxu0 0
    %1035 = vmatprep.subr.bf16.mxu0 0
    %1036 = vmatpush1.bf16.msra.mxu0 0
    %1037 = vmatprep.subr.bf16.mxu0 0
    %1038 = vmatpush1.bf16.msra.mxu0 0
    %1039 = vmatprep.mubr.bf16.mxu0 0
    %1040 = vmatmul.mubr.bf16.gmra.mrb[0].mxu0 %v1006
    %v1041 = vpop.f32.mrb[0].mxu0
    %v1042 = vadd.f32 0.0, %v1041
    %v1043 = vpop.f32.mrb[0].mxu0
    %v1044 = vpop.f32.mrb[0].mxu0
    %v1045 = vpop.f32.mrb[0].mxu0
    %1046 = vdwg.mxu0
    %1047 = vmatprep.subr.bf16.mxu0 0
    %1048 = vmatpush1.bf16.msra.mxu0 %v221
    %1049 = vmatprep.subr.bf16.mxu0 0
    %1050 = vmatpush1.bf16.msra.mxu0 %v222
    %1051 = vmatprep.subr.bf16.mxu0 0
    %1052 = vmatpush1.bf16.msra.mxu0 %v223
    %1053 = vmatprep.subr.bf16.mxu0 0
    %1054 = vmatpush1.bf16.msra.mxu0 %v224
    %1055 = vmatprep.subr.bf16.mxu0 0
    %1056 = vmatpush1.bf16.msra.mxu0 %v225
    %1057 = vmatprep.subr.bf16.mxu0 0
    %1058 = vmatpush1.bf16.msra.mxu0 %v226
    %1059 = vmatprep.subr.bf16.mxu0 0
    %1060 = vmatpush1.bf16.msra.mxu0 %v227
    %1061 = vmatprep.subr.bf16.mxu0 0
    %1062 = vmatpush1.bf16.msra.mxu0 %v228
    %1063 = vmatprep.subr.bf16.mxu0 0
    %1064 = vmatpush1.bf16.msra.mxu0 0
    %1065 = vmatprep.subr.bf16.mxu0 0
    %1066 = vmatpush1.bf16.msra.mxu0 0
    %1067 = vmatprep.subr.bf16.mxu0 0
    %1068 = vmatpush1.bf16.msra.mxu0 0
    %1069 = vmatprep.subr.bf16.mxu0 0
    %1070 = vmatpush1.bf16.msra.mxu0 0
    %1071 = vmatprep.subr.bf16.mxu0 0
    %1072 = vmatpush1.bf16.msra.mxu0 0
    %1073 = vmatprep.subr.bf16.mxu0 0
    %1074 = vmatpush1.bf16.msra.mxu0 0
    %1075 = vmatprep.subr.bf16.mxu0 0
    %1076 = vmatpush1.bf16.msra.mxu0 0
    %1077 = vmatprep.subr.bf16.mxu0 0
    %1078 = vmatpush1.bf16.msra.mxu0 0
    %1079 = vmatprep.mubr.bf16.mxu0 0
    %1080 = vmatmul.mubr.bf16.gmra.mrb[0].mxu0 %v1006
    %v1081 = vpop.f32.mrb[0].mxu0
    %v1082 = vadd.f32 0.0, %v1081
    %v1083 = vpop.f32.mrb[0].mxu0
    %v1084 = vpop.f32.mrb[0].mxu0
    %v1085 = vpop.f32.mrb[0].mxu0
    %1086 = vdwg.mxu0
    %s1087 = scalar_lea.vmem [#allocation3], 20
    %v1088 = vld [vmem:[%s1087] sm:$0xf]
    %v1089 = vunpack.c.l.bf16 %v1088
    %v1090 = vadd.f32 %v1089, %v1042
    %v1091 = vxor.u32 %v1090, 2147483648
    %v1092 = vmul.f32 %v1091, 1.442695
    %v1093 = vpow.pop %v1092
    %v1094 = vadd.f32 %v1093, 1.0
    %v1095 = vrcp.pop %v1094
    %v1096 = vmul.f32 1.0, %v1095
    %s1097 = scalar_lea.vmem [#allocation6], 20
    %v1098 = vld [vmem:[%s1097] sm:$0xf]
    %v1099 = vunpack.c.l.bf16 %v1098
    %v1100 = vadd.f32 %v1099, %v1082
    %v1101 = vxor.u32 %v1100, 2147483648
    %v1102 = vmul.f32 %v1101, 1.442695
    %v1103 = vpow.pop %v1102
    %v1104 = vadd.f32 %v1103, 1.0
    %v1105 = vrcp.pop %v1104
    %v1106 = vmul.f32 1.0, %v1105
    %s1107 = scalar_lea.vmem [#allocation8], 20
    %v1108 = vld [vmem:[%s1107] sm:$0xf]
    %v1109 = vunpack.c.l.bf16 %v1108
    %1110 = vmatprep.subr.bf16.mxu0 0
    %1111 = vmatpush1.bf16.msra.mxu0 %v335
    %1112 = vmatprep.subr.bf16.mxu0 0
    %1113 = vmatpush1.bf16.msra.mxu0 %v336
    %1114 = vmatprep.subr.bf16.mxu0 0
    %1115 = vmatpush1.bf16.msra.mxu0 %v337
    %1116 = vmatprep.subr.bf16.mxu0 0
    %1117 = vmatpush1.bf16.msra.mxu0 %v338
    %1118 = vmatprep.subr.bf16.mxu0 0
    %1119 = vmatpush1.bf16.msra.mxu0 %v339
    %1120 = vmatprep.subr.bf16.mxu0 0
    %1121 = vmatpush1.bf16.msra.mxu0 %v340
    %1122 = vmatprep.subr.bf16.mxu0 0
    %1123 = vmatpush1.bf16.msra.mxu0 %v341
    %1124 = vmatprep.subr.bf16.mxu0 0
    %1125 = vmatpush1.bf16.msra.mxu0 %v342
    %1126 = vmatprep.subr.bf16.mxu0 0
    %1127 = vmatpush1.bf16.msra.mxu0 0
    %1128 = vmatprep.subr.bf16.mxu0 0
    %1129 = vmatpush1.bf16.msra.mxu0 0
    %1130 = vmatprep.subr.bf16.mxu0 0
    %1131 = vmatpush1.bf16.msra.mxu0 0
    %1132 = vmatprep.subr.bf16.mxu0 0
    %1133 = vmatpush1.bf16.msra.mxu0 0
    %1134 = vmatprep.subr.bf16.mxu0 0
    %1135 = vmatpush1.bf16.msra.mxu0 0
    %1136 = vmatprep.subr.bf16.mxu0 0
    %1137 = vmatpush1.bf16.msra.mxu0 0
    %1138 = vmatprep.subr.bf16.mxu0 0
    %1139 = vmatpush1.bf16.msra.mxu0 0
    %1140 = vmatprep.subr.bf16.mxu0 0
    %1141 = vmatpush1.bf16.msra.mxu0 0
    %1142 = vmatprep.mubr.bf16.mxu0 0
    %1143 = vmatmul.mubr.bf16.gmra.mrb[0].mxu0 %v1006
    %v1144 = vpop.f32.mrb[0].mxu0
    %v1145 = vadd.f32 %v301, %v1144
    %v1146 = vpop.f32.mrb[0].mxu0
    %v1147 = vpop.f32.mrb[0].mxu0
    %v1148 = vpop.f32.mrb[0].mxu0
    %1149 = vdwg.mxu0
    %v1150 = vmul.f32 %v1096, %v1145
    %v1151 = vadd.f32 %v1109, %v1150
    %v1152 = vtanh.pop %v1151
    %v1153 = vsub.f32 %v1003, %v1152
    %v1154 = vmul.f32 %v1106, %v1153
    %v1155 = vadd.f32 %v1152, %v1154
    %s1156 = scalar_lea.vmem [#allocation11], 40
    %1157 = vst [vmem:[%s1156] sm:$0xff] %v1155
    %v1158 = vpack.c.bf16 %v1155, %v1155
    %1159 = vmatprep.subr.bf16.mxu0 0
    %1160 = vmatpush1.bf16.msra.mxu0 %v149
    %1161 = vmatprep.subr.bf16.mxu0 0
    %1162 = vmatpush1.bf16.msra.mxu0 %v150
    %1163 = vmatprep.subr.bf16.mxu0 0
    %1164 = vmatpush1.bf16.msra.mxu0 %v151
    %1165 = vmatprep.subr.bf16.mxu0 0
    %1166 = vmatpush1.bf16.msra.mxu0 %v152
    %1167 = vmatprep.subr.bf16.mxu0 0
    %1168 = vmatpush1.bf16.msra.mxu0 %v153
    %1169 = vmatprep.subr.bf16.mxu0 0
    %1170 = vmatpush1.bf16.msra.mxu0 %v154
    %1171 = vmatprep.subr.bf16.mxu0 0
    %1172 = vmatpush1.bf16.msra.mxu0 %v155
    %1173 = vmatprep.subr.bf16.mxu0 0
    %1174 = vmatpush1.bf16.msra.mxu0 %v156
    %1175 = vmatprep.subr.bf16.mxu0 0
    %1176 = vmatpush1.bf16.msra.mxu0 0
    %1177 = vmatprep.subr.bf16.mxu0 0
    %1178 = vmatpush1.bf16.msra.mxu0 0
    %1179 = vmatprep.subr.bf16.mxu0 0
    %1180 = vmatpush1.bf16.msra.mxu0 0
    %1181 = vmatprep.subr.bf16.mxu0 0
    %1182 = vmatpush1.bf16.msra.mxu0 0
    %1183 = vmatprep.subr.bf16.mxu0 0
    %1184 = vmatpush1.bf16.msra.mxu0 0
    %1185 = vmatprep.subr.bf16.mxu0 0
    %1186 = vmatpush1.bf16.msra.mxu0 0
    %1187 = vmatprep.subr.bf16.mxu0 0
    %1188 = vmatpush1.bf16.msra.mxu0 0
    %1189 = vmatprep.subr.bf16.mxu0 0
    %1190 = vmatpush1.bf16.msra.mxu0 0
    %1191 = vmatprep.mubr.bf16.mxu0 0
    %1192 = vmatmul.mubr.bf16.gmra.mrb[0].mxu0 %v1158
    %v1193 = vpop.f32.mrb[0].mxu0
    %v1194 = vadd.f32 0.0, %v1193
    %v1195 = vpop.f32.mrb[0].mxu0
    %v1196 = vpop.f32.mrb[0].mxu0
    %v1197 = vpop.f32.mrb[0].mxu0
    %1198 = vdwg.mxu0
    %1199 = vmatprep.subr.bf16.mxu0 0
    %1200 = vmatpush1.bf16.msra.mxu0 %v221
    %1201 = vmatprep.subr.bf16.mxu0 0
    %1202 = vmatpush1.bf16.msra.mxu0 %v222
    %1203 = vmatprep.subr.bf16.mxu0 0
    %1204 = vmatpush1.bf16.msra.mxu0 %v223
    %1205 = vmatprep.subr.bf16.mxu0 0
    %1206 = vmatpush1.bf16.msra.mxu0 %v224
    %1207 = vmatprep.subr.bf16.mxu0 0
    %1208 = vmatpush1.bf16.msra.mxu0 %v225
    %1209 = vmatprep.subr.bf16.mxu0 0
    %1210 = vmatpush1.bf16.msra.mxu0 %v226
    %1211 = vmatprep.subr.bf16.mxu0 0
    %1212 = vmatpush1.bf16.msra.mxu0 %v227
    %1213 = vmatprep.subr.bf16.mxu0 0
    %1214 = vmatpush1.bf16.msra.mxu0 %v228
    %1215 = vmatprep.subr.bf16.mxu0 0
    %1216 = vmatpush1.bf16.msra.mxu0 0
    %1217 = vmatprep.subr.bf16.mxu0 0
    %1218 = vmatpush1.bf16.msra.mxu0 0
    %1219 = vmatprep.subr.bf16.mxu0 0
    %1220 = vmatpush1.bf16.msra.mxu0 0
    %1221 = vmatprep.subr.bf16.mxu0 0
    %1222 = vmatpush1.bf16.msra.mxu0 0
    %1223 = vmatprep.subr.bf16.mxu0 0
    %1224 = vmatpush1.bf16.msra.mxu0 0
    %1225 = vmatprep.subr.bf16.mxu0 0
    %1226 = vmatpush1.bf16.msra.mxu0 0
    %1227 = vmatprep.subr.bf16.mxu0 0
    %1228 = vmatpush1.bf16.msra.mxu0 0
    %1229 = vmatprep.subr.bf16.mxu0 0
    %1230 = vmatpush1.bf16.msra.mxu0 0
    %1231 = vmatprep.mubr.bf16.mxu0 0
    %1232 = vmatmul.mubr.bf16.gmra.mrb[0].mxu0 %v1158
    %v1233 = vpop.f32.mrb[0].mxu0
    %v1234 = vadd.f32 0.0, %v1233
    %v1235 = vpop.f32.mrb[0].mxu0
    %v1236 = vpop.f32.mrb[0].mxu0
    %v1237 = vpop.f32.mrb[0].mxu0
    %1238 = vdwg.mxu0
    %s1239 = scalar_lea.vmem [#allocation3], 24
    %v1240 = vld [vmem:[%s1239] sm:$0xf]
    %v1241 = vunpack.c.l.bf16 %v1240
    %v1242 = vadd.f32 %v1241, %v1194
    %v1243 = vxor.u32 %v1242, 2147483648
    %v1244 = vmul.f32 %v1243, 1.442695
    %v1245 = vpow.pop %v1244
    %v1246 = vadd.f32 %v1245, 1.0
    %v1247 = vrcp.pop %v1246
    %v1248 = vmul.f32 1.0, %v1247
    %s1249 = scalar_lea.vmem [#allocation6], 24
    %v1250 = vld [vmem:[%s1249] sm:$0xf]
    %v1251 = vunpack.c.l.bf16 %v1250
    %v1252 = vadd.f32 %v1251, %v1234
    %v1253 = vxor.u32 %v1252, 2147483648
    %v1254 = vmul.f32 %v1253, 1.442695
    %v1255 = vpow.pop %v1254
    %v1256 = vadd.f32 %v1255, 1.0
    %v1257 = vrcp.pop %v1256
    %v1258 = vmul.f32 1.0, %v1257
    %s1259 = scalar_lea.vmem [#allocation8], 24
    %v1260 = vld [vmem:[%s1259] sm:$0xf]
    %v1261 = vunpack.c.l.bf16 %v1260
    %1262 = vmatprep.subr.bf16.mxu0 0
    %1263 = vmatpush1.bf16.msra.mxu0 %v335
    %1264 = vmatprep.subr.bf16.mxu0 0
    %1265 = vmatpush1.bf16.msra.mxu0 %v336
    %1266 = vmatprep.subr.bf16.mxu0 0
    %1267 = vmatpush1.bf16.msra.mxu0 %v337
    %1268 = vmatprep.subr.bf16.mxu0 0
    %1269 = vmatpush1.bf16.msra.mxu0 %v338
    %1270 = vmatprep.subr.bf16.mxu0 0
    %1271 = vmatpush1.bf16.msra.mxu0 %v339
    %1272 = vmatprep.subr.bf16.mxu0 0
    %1273 = vmatpush1.bf16.msra.mxu0 %v340
    %1274 = vmatprep.subr.bf16.mxu0 0
    %1275 = vmatpush1.bf16.msra.mxu0 %v341
    %1276 = vmatprep.subr.bf16.mxu0 0
    %1277 = vmatpush1.bf16.msra.mxu0 %v342
    %1278 = vmatprep.subr.bf16.mxu0 0
    %1279 = vmatpush1.bf16.msra.mxu0 0
    %1280 = vmatprep.subr.bf16.mxu0 0
    %1281 = vmatpush1.bf16.msra.mxu0 0
    %1282 = vmatprep.subr.bf16.mxu0 0
    %1283 = vmatpush1.bf16.msra.mxu0 0
    %1284 = vmatprep.subr.bf16.mxu0 0
    %1285 = vmatpush1.bf16.msra.mxu0 0
    %1286 = vmatprep.subr.bf16.mxu0 0
    %1287 = vmatpush1.bf16.msra.mxu0 0
    %1288 = vmatprep.subr.bf16.mxu0 0
    %1289 = vmatpush1.bf16.msra.mxu0 0
    %1290 = vmatprep.subr.bf16.mxu0 0
    %1291 = vmatpush1.bf16.msra.mxu0 0
    %1292 = vmatprep.subr.bf16.mxu0 0
    %1293 = vmatpush1.bf16.msra.mxu0 0
    %1294 = vmatprep.mubr.bf16.mxu0 0
    %1295 = vmatmul.mubr.bf16.gmra.mrb[0].mxu0 %v1158
    %v1296 = vpop.f32.mrb[0].mxu0
    %v1297 = vadd.f32 %v301, %v1296
    %v1298 = vpop.f32.mrb[0].mxu0
    %v1299 = vpop.f32.mrb[0].mxu0
    %v1300 = vpop.f32.mrb[0].mxu0
    %1301 = vdwg.mxu0
    %v1302 = vmul.f32 %v1248, %v1297
    %v1303 = vadd.f32 %v1261, %v1302
    %v1304 = vtanh.pop %v1303
    %v1305 = vsub.f32 %v1155, %v1304
    %v1306 = vmul.f32 %v1258, %v1305
    %v1307 = vadd.f32 %v1304, %v1306
    %s1308 = scalar_lea.vmem [#allocation11], 48
    %1309 = vst [vmem:[%s1308] sm:$0xff] %v1307
    %v1310 = vpack.c.bf16 %v1307, %v1307
    %1311 = vmatprep.subr.bf16.mxu0 0
    %1312 = vmatpush1.bf16.msra.mxu0 %v149
    %1313 = vmatprep.subr.bf16.mxu0 0
    %1314 = vmatpush1.bf16.msra.mxu0 %v150
    %1315 = vmatprep.subr.bf16.mxu0 0
    %1316 = vmatpush1.bf16.msra.mxu0 %v151
    %1317 = vmatprep.subr.bf16.mxu0 0
    %1318 = vmatpush1.bf16.msra.mxu0 %v152
    %1319 = vmatprep.subr.bf16.mxu0 0
    %1320 = vmatpush1.bf16.msra.mxu0 %v153
    %1321 = vmatprep.subr.bf16.mxu0 0
    %1322 = vmatpush1.bf16.msra.mxu0 %v154
    %1323 = vmatprep.subr.bf16.mxu0 0
    %1324 = vmatpush1.bf16.msra.mxu0 %v155
    %1325 = vmatprep.subr.bf16.mxu0 0
    %1326 = vmatpush1.bf16.msra.mxu0 %v156
    %1327 = vmatprep.subr.bf16.mxu0 0
    %1328 = vmatpush1.bf16.msra.mxu0 0
    %1329 = vmatprep.subr.bf16.mxu0 0
    %1330 = vmatpush1.bf16.msra.mxu0 0
    %1331 = vmatprep.subr.bf16.mxu0 0
    %1332 = vmatpush1.bf16.msra.mxu0 0
    %1333 = vmatprep.subr.bf16.mxu0 0
    %1334 = vmatpush1.bf16.msra.mxu0 0
    %1335 = vmatprep.subr.bf16.mxu0 0
    %1336 = vmatpush1.bf16.msra.mxu0 0
    %1337 = vmatprep.subr.bf16.mxu0 0
    %1338 = vmatpush1.bf16.msra.mxu0 0
    %1339 = vmatprep.subr.bf16.mxu0 0
    %1340 = vmatpush1.bf16.msra.mxu0 0
    %1341 = vmatprep.subr.bf16.mxu0 0
    %1342 = vmatpush1.bf16.msra.mxu0 0
    %1343 = vmatprep.mubr.bf16.mxu0 0
    %1344 = vmatmul.mubr.bf16.gmra.mrb[0].mxu0 %v1310
    %v1345 = vpop.f32.mrb[0].mxu0
    %v1346 = vadd.f32 0.0, %v1345
    %v1347 = vpop.f32.mrb[0].mxu0
    %v1348 = vpop.f32.mrb[0].mxu0
    %v1349 = vpop.f32.mrb[0].mxu0
    %1350 = vdwg.mxu0
    %1351 = vmatprep.subr.bf16.mxu0 0
    %1352 = vmatpush1.bf16.msra.mxu0 %v221
    %1353 = vmatprep.subr.bf16.mxu0 0
    %1354 = vmatpush1.bf16.msra.mxu0 %v222
    %1355 = vmatprep.subr.bf16.mxu0 0
    %1356 = vmatpush1.bf16.msra.mxu0 %v223
    %1357 = vmatprep.subr.bf16.mxu0 0
    %1358 = vmatpush1.bf16.msra.mxu0 %v224
    %1359 = vmatprep.subr.bf16.mxu0 0
    %1360 = vmatpush1.bf16.msra.mxu0 %v225
    %1361 = vmatprep.subr.bf16.mxu0 0
    %1362 = vmatpush1.bf16.msra.mxu0 %v226
    %1363 = vmatprep.subr.bf16.mxu0 0
    %1364 = vmatpush1.bf16.msra.mxu0 %v227
    %1365 = vmatprep.subr.bf16.mxu0 0
    %1366 = vmatpush1.bf16.msra.mxu0 %v228
    %1367 = vmatprep.subr.bf16.mxu0 0
    %1368 = vmatpush1.bf16.msra.mxu0 0
    %1369 = vmatprep.subr.bf16.mxu0 0
    %1370 = vmatpush1.bf16.msra.mxu0 0
    %1371 = vmatprep.subr.bf16.mxu0 0
    %1372 = vmatpush1.bf16.msra.mxu0 0
    %1373 = vmatprep.subr.bf16.mxu0 0
    %1374 = vmatpush1.bf16.msra.mxu0 0
    %1375 = vmatprep.subr.bf16.mxu0 0
    %1376 = vmatpush1.bf16.msra.mxu0 0
    %1377 = vmatprep.subr.bf16.mxu0 0
    %1378 = vmatpush1.bf16.msra.mxu0 0
    %1379 = vmatprep.subr.bf16.mxu0 0
    %1380 = vmatpush1.bf16.msra.mxu0 0
    %1381 = vmatprep.subr.bf16.mxu0 0
    %1382 = vmatpush1.bf16.msra.mxu0 0
    %1383 = vmatprep.mubr.bf16.mxu0 0
    %1384 = vmatmul.mubr.bf16.gmra.mrb[0].mxu0 %v1310
    %v1385 = vpop.f32.mrb[0].mxu0
    %v1386 = vadd.f32 0.0, %v1385
    %v1387 = vpop.f32.mrb[0].mxu0
    %v1388 = vpop.f32.mrb[0].mxu0
    %v1389 = vpop.f32.mrb[0].mxu0
    %1390 = vdwg.mxu0
    %s1391 = scalar_lea.vmem [#allocation3], 28
    %v1392 = vld [vmem:[%s1391] sm:$0xf]
    %v1393 = vunpack.c.l.bf16 %v1392
    %v1394 = vadd.f32 %v1393, %v1346
    %v1395 = vxor.u32 %v1394, 2147483648
    %v1396 = vmul.f32 %v1395, 1.442695
    %v1397 = vpow.pop %v1396
    %v1398 = vadd.f32 %v1397, 1.0
    %v1399 = vrcp.pop %v1398
    %v1400 = vmul.f32 1.0, %v1399
    %s1401 = scalar_lea.vmem [#allocation6], 28
    %v1402 = vld [vmem:[%s1401] sm:$0xf]
    %v1403 = vunpack.c.l.bf16 %v1402
    %v1404 = vadd.f32 %v1403, %v1386
    %v1405 = vxor.u32 %v1404, 2147483648
    %v1406 = vmul.f32 %v1405, 1.442695
    %v1407 = vpow.pop %v1406
    %v1408 = vadd.f32 %v1407, 1.0
    %v1409 = vrcp.pop %v1408
    %v1410 = vmul.f32 1.0, %v1409
    %s1411 = scalar_lea.vmem [#allocation8], 28
    %v1412 = vld [vmem:[%s1411] sm:$0xf]
    %v1413 = vunpack.c.l.bf16 %v1412
    %1414 = vmatprep.subr.bf16.mxu0 0
    %1415 = vmatpush1.bf16.msra.mxu0 %v335
    %1416 = vmatprep.subr.bf16.mxu0 0
    %1417 = vmatpush1.bf16.msra.mxu0 %v336
    %1418 = vmatprep.subr.bf16.mxu0 0
    %1419 = vmatpush1.bf16.msra.mxu0 %v337
    %1420 = vmatprep.subr.bf16.mxu0 0
    %1421 = vmatpush1.bf16.msra.mxu0 %v338
    %1422 = vmatprep.subr.bf16.mxu0 0
    %1423 = vmatpush1.bf16.msra.mxu0 %v339
    %1424 = vmatprep.subr.bf16.mxu0 0
    %1425 = vmatpush1.bf16.msra.mxu0 %v340
    %1426 = vmatprep.subr.bf16.mxu0 0
    %1427 = vmatpush1.bf16.msra.mxu0 %v341
    %1428 = vmatprep.subr.bf16.mxu0 0
    %1429 = vmatpush1.bf16.msra.mxu0 %v342
    %1430 = vmatprep.subr.bf16.mxu0 0
    %1431 = vmatpush1.bf16.msra.mxu0 0
    %1432 = vmatprep.subr.bf16.mxu0 0
    %1433 = vmatpush1.bf16.msra.mxu0 0
    %1434 = vmatprep.subr.bf16.mxu0 0
    %1435 = vmatpush1.bf16.msra.mxu0 0
    %1436 = vmatprep.subr.bf16.mxu0 0
    %1437 = vmatpush1.bf16.msra.mxu0 0
    %1438 = vmatprep.subr.bf16.mxu0 0
    %1439 = vmatpush1.bf16.msra.mxu0 0
    %1440 = vmatprep.subr.bf16.mxu0 0
    %1441 = vmatpush1.bf16.msra.mxu0 0
    %1442 = vmatprep.subr.bf16.mxu0 0
    %1443 = vmatpush1.bf16.msra.mxu0 0
    %1444 = vmatprep.subr.bf16.mxu0 0
    %1445 = vmatpush1.bf16.msra.mxu0 0
    %1446 = vmatprep.mubr.bf16.mxu0 0
    %1447 = vmatmul.mubr.bf16.gmra.mrb[0].mxu0 %v1310
    %v1448 = vpop.f32.mrb[0].mxu0
    %v1449 = vadd.f32 %v301, %v1448
    %v1450 = vpop.f32.mrb[0].mxu0
    %v1451 = vpop.f32.mrb[0].mxu0
    %v1452 = vpop.f32.mrb[0].mxu0
    %1453 = vdwg.mxu0
    %v1454 = vmul.f32 %v1400, %v1449
    %v1455 = vadd.f32 %v1413, %v1454
    %v1456 = vtanh.pop %v1455
    %v1457 = vsub.f32 %v1307, %v1456
    %v1458 = vmul.f32 %v1410, %v1457
    %v1459 = vadd.f32 %v1456, %v1458
    %s1460 = scalar_lea.vmem [#allocation11], 56
    %1461 = vst [vmem:[%s1460] sm:$0xff] %v1459
    %1462 = vst [vmem:[#allocation2] sm:$0xff] %v1459
    // Predicated region
    $region42: #{tpu_custom_call.1} parent=1 // pred_check
      _
    $region43: #{tpu_custom_call.1} parent=1 // pred_check_branch
      %1464 = sbr.rel (0) target = $region45
    $region44: #{tpu_custom_call.1} parent=1 // pred_region
      %s1466 = ssub.s32 1024, 1024
      %1467 = vsyncadd [#allocation5], %s1466
      %s1468 = sshll.u32 [#allocation11], 4
      %s1469 = int_to_ptr.vmem [resolvable:$true] %s1468
      %1474 = dma.vmem_to_hbm [thread:$0]  %s1469, 1024, %s5, [#allocation5], 128, 128, 8
    $region45: #{tpu_custom_call.1} parent=1 // pred_fallthru
      _
    // Predicated region
    $region46: #{tpu_custom_call.1} parent=1 // pred_check
      _
    $region47: #{tpu_custom_call.1} parent=1 // pred_check_branch
      %1476 = sbr.rel (0) target = $region49
    $region48: #{tpu_custom_call.1} parent=1 // pred_region
      %1477 = dma.done [#allocation5], 1024
    $region49: #{tpu_custom_call.1} parent=1 // pred_fallthru
      _
    %1478 = vsyncpa [#allocation4], 1
    %1479 = vsyncpa [#allocation7], 1
    %1480 = vsyncpa [#allocation10], 1
    %1481 = vsyncpa [#allocation5], 1

</llo_original>
